<compile_context>
chip_gen: v7x
topology: tpu7x:2x2x1
jax: 0.10.0
libtpu: 0.0.40
codegen_flags: <defaults>
</compile_context>

<pallas_src>
import jax
import jax.numpy as jnp
from jax.experimental import pallas as pl
from jax.experimental.pallas import tpu as pltpu

NUM_LAYERS = 6


def six_layer_bn_kernel(x_ref, y_ref, scale_w_ref, scale_b_ref,
                        w1_ref, b1_ref, fused_w_ref, fused_b_ref,
                        ex6_w_ref, ex6_b_ref, loss_ref, ent_ref):
    batch = x_ref.shape[0]
    n_classes = ex6_w_ref.shape[1]
    inv_b = 1.0 / batch

    x = x_ref[...]                                      # (B, D_in) f32
    y = y_ref[...]                                      # (B, 1) int32

    # One-hot label mask built in-kernel (VPU compare) -- no (B, C) input DMA.
    class_iota = jax.lax.broadcasted_iota(jnp.int32, (batch, n_classes), 1)
    label_mask = (class_iota == y).astype(jnp.float32)  # (B, C)

    lane = jax.lax.broadcasted_iota(jnp.int32, (1, NUM_LAYERS), 1)
    ce_vec = jnp.zeros((1, NUM_LAYERS), jnp.float32)
    ent_vec = jnp.zeros((1, NUM_LAYERS), jnp.float32)

    def exit_stats(logits):
        # Numerically-stable softmax statistics without materializing p = ez/s.
        m = jnp.max(logits, axis=1, keepdims=True)                  # (B, 1)
        z = logits - m
        ez = jnp.exp(z)
        s = jnp.sum(ez, axis=1, keepdims=True)                      # (B, 1)
        log_s = jnp.log(s)
        inv_s = pl.reciprocal(s, approx=False)                      # EUP
        # sum_c p * log p  =  (sum_c ez * z) / s - log s   (per row)
        row_plogp = jnp.sum(ez * z, axis=1, keepdims=True) * inv_s - log_s
        ent = jnp.sum(row_plogp, keepdims=True) * inv_b             # (1, 1)
        # F.cross_entropy (mean) = mean(logsumexp - logits[label])
        picked = jnp.sum(label_mask * logits, axis=1, keepdims=True)
        ce = jnp.sum((log_s + m) - picked, keepdims=True) * inv_b   # (1, 1)
        return ce, ent

    # Layer 1 hidden: h1 = relu(x @ W1 + b1) -- bf16 operands, f32 accumulate.
    h = jnp.maximum(
        jnp.dot(x.astype(jnp.bfloat16), w1_ref[...],
                preferred_element_type=jnp.float32) + b1_ref[...], 0.0)

    # Steps 1..5: one fused matmul gives [exit_i logits | fc_{i+1} preact].
    for i in range(NUM_LAYERS - 1):
        fused = jnp.dot(h.astype(jnp.bfloat16), fused_w_ref[i],
                        preferred_element_type=jnp.float32) + fused_b_ref[i]
        logits = fused[:, :n_classes]                   # (B, C)
        h = jnp.maximum(fused[:, n_classes:], 0.0)      # (B, D) next hidden
        ce_i, ent_i = exit_stats(logits)
        ce_vec = jnp.where(lane == i, ce_i, ce_vec)
        ent_vec = jnp.where(lane == i, ent_i, ent_vec)

    # Final exit (layer 6).
    logits = jnp.dot(h.astype(jnp.bfloat16), ex6_w_ref[...],
                     preferred_element_type=jnp.float32) + ex6_b_ref[...]
    ce_i, ent_i = exit_stats(logits)
    ce_vec = jnp.where(lane == NUM_LAYERS - 1, ce_i, ce_vec)
    ent_vec = jnp.where(lane == NUM_LAYERS - 1, ent_i, ent_vec)

    # loss_i = scale_w_i * CE_i + scale_b_i ;  total = sum_i loss_i / 6
    losses = ce_vec * scale_w_ref[...] + scale_b_ref[...]
    loss_ref[...] = jnp.sum(losses, axis=1, keepdims=True) * (1.0 / NUM_LAYERS)
    ent_ref[...] = ent_vec


def six_layer_bn_forward(x, y, params, scale_w, scale_b, output_dim):
    """params: list of 6 tuples (fc_wT, fc_b, exit_wT, exit_b), all f32.

    Weights are pre-transposed to (in_features, out_features). The packed /
    fused fast path requires a uniform hidden width (true for this module's
    test configuration).
    """
    fc_ws, fc_bs, ex_ws, ex_bs = zip(*params)
    hidden = fc_ws[0].shape[1]
    assert all(w.shape[1] == hidden for w in fc_ws), (
        "packed/fused path needs a uniform hidden width")
    n_classes = output_dim

    # Host-side packing: 24 tensors -> 6 operands.
    w1 = fc_ws[0].astype(jnp.bfloat16)                              # (D_in, D)
    b1 = fc_bs[0]                                                   # (1, D)
    fused_w = jnp.stack(                                            # (5, D, C+D)
        [jnp.concatenate([ex_ws[i], fc_ws[i + 1]], axis=1)
         for i in range(NUM_LAYERS - 1)]).astype(jnp.bfloat16)
    fused_b = jnp.stack(                                            # (5, 1, C+D)
        [jnp.concatenate([ex_bs[i], fc_bs[i + 1]], axis=1)
         for i in range(NUM_LAYERS - 1)])
    ex6_w = ex_ws[-1].astype(jnp.bfloat16)                          # (D, C)
    ex6_b = ex_bs[-1]                                               # (1, C)
    y2d = y.astype(jnp.int32).reshape(-1, 1)                        # (B, 1)

    operands = (x, y2d, scale_w, scale_b, w1, b1, fused_w, fused_b,
                ex6_w, ex6_b)

    batch, d_in = x.shape
    flops = 2 * batch * (d_in * hidden
                         + (NUM_LAYERS - 1) * hidden * (n_classes + hidden)
                         + hidden * n_classes)
    transcendentals = NUM_LAYERS * batch * (n_classes + 2)  # exp + log + rcp
    bytes_accessed = int(sum(op.size * op.dtype.itemsize for op in operands)
                         + 4 * (1 + NUM_LAYERS))

    out_shape = (jax.ShapeDtypeStruct((1, 1), jnp.float32),
                 jax.ShapeDtypeStruct((1, NUM_LAYERS), jnp.float32))

    vmem = lambda: pl.BlockSpec(memory_space=pltpu.MemorySpace.VMEM)

    # TODO(synk): for large batches, add a batch grid (BlockSpec over rows)
    # with VMEM accumulators + pl.when finalize and "parallel" dimension
    # semantics (second v7x TensorCore); at the tiny batch exercised here a
    # single gridless invocation is fastest.
    loss, ent = pl.pallas_call(
        six_layer_bn_kernel,
        out_shape=out_shape,
        in_specs=[vmem() for _ in operands],
        out_specs=(vmem(), vmem()),
        cost_estimate=pl.CostEstimate(flops=flops,
                                      transcendentals=transcendentals,
                                      bytes_accessed=bytes_accessed),
    )(*operands)
    return loss, ent


# ----------------------------- pure-JAX references --------------------------
def _ref_forward(x, y, params, scale_w, scale_b, output_dim, mxu_bf16):
    """PyTorch-semantics reference.  mxu_bf16=True mirrors the kernel's
    bf16-operand / f32-accumulate matmul precision; False is full f32."""
    batch = x.shape[0]
    yoh = jax.nn.one_hot(y, output_dim, dtype=jnp.float32)

    def mm(a, w):
        if mxu_bf16:
            return jnp.dot(a.astype(jnp.bfloat16), w.astype(jnp.bfloat16),
                           preferred_element_type=jnp.float32)
        return jnp.dot(a, w)

    ces, ents = [], []
    h = x
    for (fc_w, fc_b, ex_w, ex_b) in params:
        h = jax.nn.relu(mm(h, fc_w) + fc_b)
        logits = mm(h, ex_w) + ex_b
        logp = jax.nn.log_softmax(logits, axis=1)
        sm = jnp.exp(logp)
        ents.append(jnp.sum(sm * logp) / batch)
        ces.append(jnp.mean(-jnp.sum(yoh * logp, axis=1)))
    ce = jnp.stack(ces)[None, :]
    loss = jnp.sum(ce * scale_w + scale_b, axis=1, keepdims=True) / NUM_LAYERS
    return loss, jnp.stack(ents)[None, :]


# ----------------------------- parameter init -------------------------------
def init_params(key, input_dim, output_dim, dims):
    params = []
    d_in = input_dim
    for i, d_out in enumerate(dims):
        k = jax.random.fold_in(key, i)
        k1, k2, k3, k4 = jax.random.split(k, 4)
        fc_w = (jax.random.normal(k1, (d_in, d_out), jnp.float32)
                * jnp.sqrt(2.0 / d_in))                       # pre-transposed
        fc_b = jax.random.uniform(k2, (1, d_out), jnp.float32,
                                  -1.0 / jnp.sqrt(d_in), 1.0 / jnp.sqrt(d_in))
        ex_w = (jax.random.normal(k3, (d_out, output_dim), jnp.float32)
                * jnp.sqrt(2.0 / d_out))                      # pre-transposed
        ex_b = jax.random.uniform(k4, (1, output_dim), jnp.float32,
                                  -1.0 / jnp.sqrt(d_out), 1.0 / jnp.sqrt(d_out))
        params.append((fc_w, fc_b, ex_w, ex_b))
        d_in = d_out
    return params


if __name__ == "__main__":
    key = jax.random.PRNGKey(0)
    batch, input_dim, output_dim = 8, 32, 8
    dims = (32, 32, 32, 32, 32, 32)
    init_exit_weights = (0.3, 0.5, 0.7, 0.9, 1.1, 1.3)

    kx, ky, kp = jax.random.split(key, 3)
    x = jax.random.normal(kx, (batch, input_dim), jnp.float32)
    y = jax.random.randint(ky, (batch,), 0, output_dim, jnp.int32)

    params = init_params(kp, input_dim, output_dim, dims)
    scale_w = jnp.asarray(init_exit_weights, jnp.float32)[None, :]   # (1, 6)
    scale_b = jnp.zeros((1, NUM_LAYERS), jnp.float32)                # bias = 0

    loss, neg_ent = six_layer_bn_forward(x, y, params, scale_w, scale_b,
                                         output_dim)
    loss = jax.block_until_ready(loss)
    neg_ent = jax.block_until_ready(neg_ent)

    # Tight check against a reference with the same MXU precision (bf16
    # operands, f32 accumulation) -- validates the kernel's math exactly.
    mxu_loss, mxu_ent = _ref_forward(x, y, params, scale_w, scale_b,
                                     output_dim, mxu_bf16=True)
    assert jnp.allclose(loss, mxu_loss, atol=1e-4, rtol=1e-4), (loss, mxu_loss)
    assert jnp.allclose(neg_ent, mxu_ent, atol=1e-4, rtol=1e-4), (neg_ent,
                                                                  mxu_ent)

    # Looser check against the full-f32 (PyTorch-semantics) reference --
    # bounds the bf16-operand approximation error.
    f32_loss, f32_ent = _ref_forward(x, y, params, scale_w, scale_b,
                                     output_dim, mxu_bf16=False)
    assert jnp.allclose(loss, f32_loss, atol=5e-2, rtol=5e-2), (loss, f32_loss)
    assert jnp.allclose(neg_ent, f32_ent, atol=5e-2, rtol=5e-2), (neg_ent,
                                                                  f32_ent)

    print("KERNEL_OK")
</pallas_src>

<mosaic_0001>
module attributes {stable_mosaic.version = 11 : i64} {
  func.func @six_layer_bn_kernel(%arg0: memref<8x32xf32, #tpu.memory_space<vmem>>, %arg1: memref<8x1xi32, #tpu.memory_space<vmem>>, %arg2: memref<1x6xf32, #tpu.memory_space<vmem>>, %arg3: memref<1x6xf32, #tpu.memory_space<vmem>>, %arg4: memref<32x32xbf16, #tpu.memory_space<vmem>>, %arg5: memref<1x32xf32, #tpu.memory_space<vmem>>, %arg6: memref<5x32x40xbf16, #tpu.memory_space<vmem>>, %arg7: memref<5x1x40xf32, #tpu.memory_space<vmem>>, %arg8: memref<32x8xbf16, #tpu.memory_space<vmem>>, %arg9: memref<1x8xf32, #tpu.memory_space<vmem>>, %arg10: memref<1x1xf32, #tpu.memory_space<vmem>>, %arg11: memref<1x6xf32, #tpu.memory_space<vmem>>) attributes {dimension_semantics = [], scalar_prefetch = 0 : i64, scratch_operands = 0 : i64, tpu.core_type = #tpu.core_type<tc>} {
    %c0 = arith.constant 0 : index
    %c0_0 = arith.constant 0 : index
    %0 = vector.load %arg0[%c0, %c0_0] : memref<8x32xf32, #tpu.memory_space<vmem>>, vector<8x32xf32>
    %c0_1 = arith.constant 0 : index
    %c0_2 = arith.constant 0 : index
    %1 = vector.load %arg1[%c0_1, %c0_2] : memref<8x1xi32, #tpu.memory_space<vmem>>, vector<8x1xi32>
    %2 = tpu.iota {dimensions = array<i32: 1>} : vector<8x8xi32>
    %3 = vector.broadcast %1 : vector<8x1xi32> to vector<8x8xi32>
    %4 = arith.cmpi eq, %2, %3 : vector<8x8xi32>
    %5 = arith.extui %4 : vector<8x8xi1> to vector<8x8xi32>
    %6 = arith.sitofp %5 : vector<8x8xi32> to vector<8x8xf32>
    %7 = tpu.iota {dimensions = array<i32: 1>} : vector<1x6xi32>
    %cst = arith.constant 0.000000e+00 : f32
    %8 = vector.broadcast %cst : f32 to vector<1x6xf32>
    %cst_3 = arith.constant 0.000000e+00 : f32
    %9 = vector.broadcast %cst_3 : f32 to vector<1x6xf32>
    %10 = arith.truncf %0 : vector<8x32xf32> to vector<8x32xbf16>
    %c0_4 = arith.constant 0 : index
    %c0_5 = arith.constant 0 : index
    %11 = vector.load %arg4[%c0_4, %c0_5] : memref<32x32xbf16, #tpu.memory_space<vmem>>, vector<32x32xbf16>
    %cst_6 = arith.constant dense<0.000000e+00> : vector<8x32xf32>
    %12 = tpu.matmul %10, %11, %cst_6 {dimension_numbers = #tpu.dot_dimension_numbers<[1], [0], [0], [1], [0, 0, 1, 1], [], []>} : vector<8x32xbf16>, vector<32x32xbf16>, vector<8x32xf32> -> vector<8x32xf32>
    %c0_7 = arith.constant 0 : index
    %c0_8 = arith.constant 0 : index
    %13 = vector.load %arg5[%c0_7, %c0_8] : memref<1x32xf32, #tpu.memory_space<vmem>>, vector<1x32xf32>
    %14 = vector.broadcast %13 : vector<1x32xf32> to vector<8x32xf32>
    %15 = arith.addf %12, %14 : vector<8x32xf32>
    %cst_9 = arith.constant 0.000000e+00 : f32
    %16 = vector.broadcast %cst_9 : f32 to vector<8x32xf32>
    %17 = arith.maximumf %15, %16 : vector<8x32xf32>
    %18 = arith.truncf %17 : vector<8x32xf32> to vector<8x32xbf16>
    %c0_10 = arith.constant 0 : index
    %c0_11 = arith.constant 0 : index
    %c0_12 = arith.constant 0 : index
    %19 = vector.load %arg6[%c0_10, %c0_11, %c0_12] : memref<5x32x40xbf16, #tpu.memory_space<vmem>>, vector<1x32x40xbf16>
    %20 = vector.shape_cast %19 : vector<1x32x40xbf16> to vector<32x40xbf16>
    %cst_13 = arith.constant dense<0.000000e+00> : vector<8x40xf32>
    %21 = tpu.matmul %18, %20, %cst_13 {dimension_numbers = #tpu.dot_dimension_numbers<[1], [0], [0], [1], [0, 0, 1, 1], [], []>} : vector<8x32xbf16>, vector<32x40xbf16>, vector<8x40xf32> -> vector<8x40xf32>
    %c0_14 = arith.constant 0 : index
    %c0_15 = arith.constant 0 : index
    %c0_16 = arith.constant 0 : index
    %22 = vector.load %arg7[%c0_14, %c0_15, %c0_16] : memref<5x1x40xf32, #tpu.memory_space<vmem>>, vector<1x1x40xf32>
    %23 = vector.shape_cast %22 : vector<1x1x40xf32> to vector<1x40xf32>
    %24 = vector.broadcast %23 : vector<1x40xf32> to vector<8x40xf32>
    %25 = arith.addf %21, %24 : vector<8x40xf32>
    %26 = vector.extract_strided_slice %25 {offsets = [0, 0], sizes = [8, 8], strides = [1, 1]} : vector<8x40xf32> to vector<8x8xf32>
    %27 = vector.extract_strided_slice %25 {offsets = [0, 8], sizes = [8, 32], strides = [1, 1]} : vector<8x40xf32> to vector<8x32xf32>
    %cst_17 = arith.constant 0.000000e+00 : f32
    %28 = vector.broadcast %cst_17 : f32 to vector<8x32xf32>
    %29 = arith.maximumf %27, %28 : vector<8x32xf32>
    %cst_18 = arith.constant dense<0xFF800000> : vector<8xf32>
    %30 = vector.multi_reduction <maximumf>, %26, %cst_18 [1] : vector<8x8xf32> to vector<8xf32>
    %31 = vector.shape_cast %30 : vector<8xf32> to vector<8x1xf32>
    %32 = vector.broadcast %31 : vector<8x1xf32> to vector<8x8xf32>
    %33 = arith.subf %26, %32 : vector<8x8xf32>
    %34 = math.exp %33 : vector<8x8xf32>
    %cst_19 = arith.constant dense<0.000000e+00> : vector<8xf32>
    %35 = vector.multi_reduction <add>, %34, %cst_19 [1] : vector<8x8xf32> to vector<8xf32>
    %36 = vector.shape_cast %35 : vector<8xf32> to vector<8x1xf32>
    %37 = math.log %36 : vector<8x1xf32>
    %38 = tpu.reciprocal %36 : vector<8x1xf32> -> vector<8x1xf32>
    %39 = arith.mulf %34, %33 : vector<8x8xf32>
    %cst_20 = arith.constant dense<0.000000e+00> : vector<8xf32>
    %40 = vector.multi_reduction <add>, %39, %cst_20 [1] : vector<8x8xf32> to vector<8xf32>
    %41 = vector.shape_cast %40 : vector<8xf32> to vector<8x1xf32>
    %42 = arith.mulf %41, %38 : vector<8x1xf32>
    %43 = arith.subf %42, %37 : vector<8x1xf32>
    %44 = vector.shape_cast %43 : vector<8x1xf32> to vector<1x8x1xf32>
    %cst_21 = arith.constant dense<0.000000e+00> : vector<1xf32>
    %45 = vector.multi_reduction <add>, %44, %cst_21 [1, 2] : vector<1x8x1xf32> to vector<1xf32>
    %46 = vector.shape_cast %45 : vector<1xf32> to vector<1x1x1xf32>
    %47 = vector.extract %46[0, 0, 0] : f32 from vector<1x1x1xf32>
    %48 = vector.broadcast %47 : f32 to vector<1x1xf32>
    %cst_22 = arith.constant 1.250000e-01 : f32
    %49 = vector.broadcast %cst_22 : f32 to vector<1x1xf32>
    %50 = arith.mulf %48, %49 : vector<1x1xf32>
    %51 = arith.mulf %6, %26 : vector<8x8xf32>
    %cst_23 = arith.constant dense<0.000000e+00> : vector<8xf32>
    %52 = vector.multi_reduction <add>, %51, %cst_23 [1] : vector<8x8xf32> to vector<8xf32>
    %53 = vector.shape_cast %52 : vector<8xf32> to vector<8x1xf32>
    %54 = arith.addf %37, %31 : vector<8x1xf32>
    %55 = arith.subf %54, %53 : vector<8x1xf32>
    %56 = vector.shape_cast %55 : vector<8x1xf32> to vector<1x8x1xf32>
    %cst_24 = arith.constant dense<0.000000e+00> : vector<1xf32>
    %57 = vector.multi_reduction <add>, %56, %cst_24 [1, 2] : vector<1x8x1xf32> to vector<1xf32>
    %58 = vector.shape_cast %57 : vector<1xf32> to vector<1x1x1xf32>
    %59 = vector.extract %58[0, 0, 0] : f32 from vector<1x1x1xf32>
    %60 = vector.broadcast %59 : f32 to vector<1x1xf32>
    %cst_25 = arith.constant 1.250000e-01 : f32
    %61 = vector.broadcast %cst_25 : f32 to vector<1x1xf32>
    %62 = arith.mulf %60, %61 : vector<1x1xf32>
    %c0_i32 = arith.constant 0 : i32
    %63 = vector.broadcast %c0_i32 : i32 to vector<1x6xi32>
    %64 = arith.cmpi eq, %7, %63 : vector<1x6xi32>
    %65 = vector.shape_cast %62 : vector<1x1xf32> to vector<1x1xf32>
    %66 = vector.broadcast %65 : vector<1x1xf32> to vector<1x6xf32>
    %67 = arith.select %64, %66, %8 : vector<1x6xi1>, vector<1x6xf32>
    %c0_i32_26 = arith.constant 0 : i32
    %68 = vector.broadcast %c0_i32_26 : i32 to vector<1x6xi32>
    %69 = arith.cmpi eq, %7, %68 : vector<1x6xi32>
    %70 = vector.shape_cast %50 : vector<1x1xf32> to vector<1x1xf32>
    %71 = vector.broadcast %70 : vector<1x1xf32> to vector<1x6xf32>
    %72 = arith.select %69, %71, %9 : vector<1x6xi1>, vector<1x6xf32>
    %73 = arith.truncf %29 : vector<8x32xf32> to vector<8x32xbf16>
    %c1 = arith.constant 1 : index
    %c0_27 = arith.constant 0 : index
    %c0_28 = arith.constant 0 : index
    %74 = vector.load %arg6[%c1, %c0_27, %c0_28] : memref<5x32x40xbf16, #tpu.memory_space<vmem>>, vector<1x32x40xbf16>
    %75 = vector.shape_cast %74 : vector<1x32x40xbf16> to vector<32x40xbf16>
    %cst_29 = arith.constant dense<0.000000e+00> : vector<8x40xf32>
    %76 = tpu.matmul %73, %75, %cst_29 {dimension_numbers = #tpu.dot_dimension_numbers<[1], [0], [0], [1], [0, 0, 1, 1], [], []>} : vector<8x32xbf16>, vector<32x40xbf16>, vector<8x40xf32> -> vector<8x40xf32>
    %c1_30 = arith.constant 1 : index
    %c0_31 = arith.constant 0 : index
    %c0_32 = arith.constant 0 : index
    %77 = vector.load %arg7[%c1_30, %c0_31, %c0_32] : memref<5x1x40xf32, #tpu.memory_space<vmem>>, vector<1x1x40xf32>
    %78 = vector.shape_cast %77 : vector<1x1x40xf32> to vector<1x40xf32>
    %79 = vector.broadcast %78 : vector<1x40xf32> to vector<8x40xf32>
    %80 = arith.addf %76, %79 : vector<8x40xf32>
    %81 = vector.extract_strided_slice %80 {offsets = [0, 0], sizes = [8, 8], strides = [1, 1]} : vector<8x40xf32> to vector<8x8xf32>
    %82 = vector.extract_strided_slice %80 {offsets = [0, 8], sizes = [8, 32], strides = [1, 1]} : vector<8x40xf32> to vector<8x32xf32>
    %cst_33 = arith.constant 0.000000e+00 : f32
    %83 = vector.broadcast %cst_33 : f32 to vector<8x32xf32>
    %84 = arith.maximumf %82, %83 : vector<8x32xf32>
    %cst_34 = arith.constant dense<0xFF800000> : vector<8xf32>
    %85 = vector.multi_reduction <maximumf>, %81, %cst_34 [1] : vector<8x8xf32> to vector<8xf32>
    %86 = vector.shape_cast %85 : vector<8xf32> to vector<8x1xf32>
    %87 = vector.broadcast %86 : vector<8x1xf32> to vector<8x8xf32>
    %88 = arith.subf %81, %87 : vector<8x8xf32>
    %89 = math.exp %88 : vector<8x8xf32>
    %cst_35 = arith.constant dense<0.000000e+00> : vector<8xf32>
    %90 = vector.multi_reduction <add>, %89, %cst_35 [1] : vector<8x8xf32> to vector<8xf32>
    %91 = vector.shape_cast %90 : vector<8xf32> to vector<8x1xf32>
    %92 = math.log %91 : vector<8x1xf32>
    %93 = tpu.reciprocal %91 : vector<8x1xf32> -> vector<8x1xf32>
    %94 = arith.mulf %89, %88 : vector<8x8xf32>
    %cst_36 = arith.constant dense<0.000000e+00> : vector<8xf32>
    %95 = vector.multi_reduction <add>, %94, %cst_36 [1] : vector<8x8xf32> to vector<8xf32>
    %96 = vector.shape_cast %95 : vector<8xf32> to vector<8x1xf32>
    %97 = arith.mulf %96, %93 : vector<8x1xf32>
    %98 = arith.subf %97, %92 : vector<8x1xf32>
    %99 = vector.shape_cast %98 : vector<8x1xf32> to vector<1x8x1xf32>
    %cst_37 = arith.constant dense<0.000000e+00> : vector<1xf32>
    %100 = vector.multi_reduction <add>, %99, %cst_37 [1, 2] : vector<1x8x1xf32> to vector<1xf32>
    %101 = vector.shape_cast %100 : vector<1xf32> to vector<1x1x1xf32>
    %102 = vector.extract %101[0, 0, 0] : f32 from vector<1x1x1xf32>
    %103 = vector.broadcast %102 : f32 to vector<1x1xf32>
    %cst_38 = arith.constant 1.250000e-01 : f32
    %104 = vector.broadcast %cst_38 : f32 to vector<1x1xf32>
    %105 = arith.mulf %103, %104 : vector<1x1xf32>
    %106 = arith.mulf %6, %81 : vector<8x8xf32>
    %cst_39 = arith.constant dense<0.000000e+00> : vector<8xf32>
    %107 = vector.multi_reduction <add>, %106, %cst_39 [1] : vector<8x8xf32> to vector<8xf32>
    %108 = vector.shape_cast %107 : vector<8xf32> to vector<8x1xf32>
    %109 = arith.addf %92, %86 : vector<8x1xf32>
    %110 = arith.subf %109, %108 : vector<8x1xf32>
    %111 = vector.shape_cast %110 : vector<8x1xf32> to vector<1x8x1xf32>
    %cst_40 = arith.constant dense<0.000000e+00> : vector<1xf32>
    %112 = vector.multi_reduction <add>, %111, %cst_40 [1, 2] : vector<1x8x1xf32> to vector<1xf32>
    %113 = vector.shape_cast %112 : vector<1xf32> to vector<1x1x1xf32>
    %114 = vector.extract %113[0, 0, 0] : f32 from vector<1x1x1xf32>
    %115 = vector.broadcast %114 : f32 to vector<1x1xf32>
    %cst_41 = arith.constant 1.250000e-01 : f32
    %116 = vector.broadcast %cst_41 : f32 to vector<1x1xf32>
    %117 = arith.mulf %115, %116 : vector<1x1xf32>
    %c1_i32 = arith.constant 1 : i32
    %118 = vector.broadcast %c1_i32 : i32 to vector<1x6xi32>
    %119 = arith.cmpi eq, %7, %118 : vector<1x6xi32>
    %120 = vector.shape_cast %117 : vector<1x1xf32> to vector<1x1xf32>
    %121 = vector.broadcast %120 : vector<1x1xf32> to vector<1x6xf32>
    %122 = arith.select %119, %121, %67 : vector<1x6xi1>, vector<1x6xf32>
    %c1_i32_42 = arith.constant 1 : i32
    %123 = vector.broadcast %c1_i32_42 : i32 to vector<1x6xi32>
    %124 = arith.cmpi eq, %7, %123 : vector<1x6xi32>
    %125 = vector.shape_cast %105 : vector<1x1xf32> to vector<1x1xf32>
    %126 = vector.broadcast %125 : vector<1x1xf32> to vector<1x6xf32>
    %127 = arith.select %124, %126, %72 : vector<1x6xi1>, vector<1x6xf32>
    %128 = arith.truncf %84 : vector<8x32xf32> to vector<8x32xbf16>
    %c2 = arith.constant 2 : index
    %c0_43 = arith.constant 0 : index
    %c0_44 = arith.constant 0 : index
    %129 = vector.load %arg6[%c2, %c0_43, %c0_44] : memref<5x32x40xbf16, #tpu.memory_space<vmem>>, vector<1x32x40xbf16>
    %130 = vector.shape_cast %129 : vector<1x32x40xbf16> to vector<32x40xbf16>
    %cst_45 = arith.constant dense<0.000000e+00> : vector<8x40xf32>
    %131 = tpu.matmul %128, %130, %cst_45 {dimension_numbers = #tpu.dot_dimension_numbers<[1], [0], [0], [1], [0, 0, 1, 1], [], []>} : vector<8x32xbf16>, vector<32x40xbf16>, vector<8x40xf32> -> vector<8x40xf32>
    %c2_46 = arith.constant 2 : index
    %c0_47 = arith.constant 0 : index
    %c0_48 = arith.constant 0 : index
    %132 = vector.load %arg7[%c2_46, %c0_47, %c0_48] : memref<5x1x40xf32, #tpu.memory_space<vmem>>, vector<1x1x40xf32>
    %133 = vector.shape_cast %132 : vector<1x1x40xf32> to vector<1x40xf32>
    %134 = vector.broadcast %133 : vector<1x40xf32> to vector<8x40xf32>
    %135 = arith.addf %131, %134 : vector<8x40xf32>
    %136 = vector.extract_strided_slice %135 {offsets = [0, 0], sizes = [8, 8], strides = [1, 1]} : vector<8x40xf32> to vector<8x8xf32>
    %137 = vector.extract_strided_slice %135 {offsets = [0, 8], sizes = [8, 32], strides = [1, 1]} : vector<8x40xf32> to vector<8x32xf32>
    %cst_49 = arith.constant 0.000000e+00 : f32
    %138 = vector.broadcast %cst_49 : f32 to vector<8x32xf32>
    %139 = arith.maximumf %137, %138 : vector<8x32xf32>
    %cst_50 = arith.constant dense<0xFF800000> : vector<8xf32>
    %140 = vector.multi_reduction <maximumf>, %136, %cst_50 [1] : vector<8x8xf32> to vector<8xf32>
    %141 = vector.shape_cast %140 : vector<8xf32> to vector<8x1xf32>
    %142 = vector.broadcast %141 : vector<8x1xf32> to vector<8x8xf32>
    %143 = arith.subf %136, %142 : vector<8x8xf32>
    %144 = math.exp %143 : vector<8x8xf32>
    %cst_51 = arith.constant dense<0.000000e+00> : vector<8xf32>
    %145 = vector.multi_reduction <add>, %144, %cst_51 [1] : vector<8x8xf32> to vector<8xf32>
    %146 = vector.shape_cast %145 : vector<8xf32> to vector<8x1xf32>
    %147 = math.log %146 : vector<8x1xf32>
    %148 = tpu.reciprocal %146 : vector<8x1xf32> -> vector<8x1xf32>
    %149 = arith.mulf %144, %143 : vector<8x8xf32>
    %cst_52 = arith.constant dense<0.000000e+00> : vector<8xf32>
    %150 = vector.multi_reduction <add>, %149, %cst_52 [1] : vector<8x8xf32> to vector<8xf32>
    %151 = vector.shape_cast %150 : vector<8xf32> to vector<8x1xf32>
    %152 = arith.mulf %151, %148 : vector<8x1xf32>
    %153 = arith.subf %152, %147 : vector<8x1xf32>
    %154 = vector.shape_cast %153 : vector<8x1xf32> to vector<1x8x1xf32>
    %cst_53 = arith.constant dense<0.000000e+00> : vector<1xf32>
    %155 = vector.multi_reduction <add>, %154, %cst_53 [1, 2] : vector<1x8x1xf32> to vector<1xf32>
    %156 = vector.shape_cast %155 : vector<1xf32> to vector<1x1x1xf32>
    %157 = vector.extract %156[0, 0, 0] : f32 from vector<1x1x1xf32>
    %158 = vector.broadcast %157 : f32 to vector<1x1xf32>
    %cst_54 = arith.constant 1.250000e-01 : f32
    %159 = vector.broadcast %cst_54 : f32 to vector<1x1xf32>
    %160 = arith.mulf %158, %159 : vector<1x1xf32>
    %161 = arith.mulf %6, %136 : vector<8x8xf32>
    %cst_55 = arith.constant dense<0.000000e+00> : vector<8xf32>
    %162 = vector.multi_reduction <add>, %161, %cst_55 [1] : vector<8x8xf32> to vector<8xf32>
    %163 = vector.shape_cast %162 : vector<8xf32> to vector<8x1xf32>
    %164 = arith.addf %147, %141 : vector<8x1xf32>
    %165 = arith.subf %164, %163 : vector<8x1xf32>
    %166 = vector.shape_cast %165 : vector<8x1xf32> to vector<1x8x1xf32>
    %cst_56 = arith.constant dense<0.000000e+00> : vector<1xf32>
    %167 = vector.multi_reduction <add>, %166, %cst_56 [1, 2] : vector<1x8x1xf32> to vector<1xf32>
    %168 = vector.shape_cast %167 : vector<1xf32> to vector<1x1x1xf32>
    %169 = vector.extract %168[0, 0, 0] : f32 from vector<1x1x1xf32>
    %170 = vector.broadcast %169 : f32 to vector<1x1xf32>
    %cst_57 = arith.constant 1.250000e-01 : f32
    %171 = vector.broadcast %cst_57 : f32 to vector<1x1xf32>
    %172 = arith.mulf %170, %171 : vector<1x1xf32>
    %c2_i32 = arith.constant 2 : i32
    %173 = vector.broadcast %c2_i32 : i32 to vector<1x6xi32>
    %174 = arith.cmpi eq, %7, %173 : vector<1x6xi32>
    %175 = vector.shape_cast %172 : vector<1x1xf32> to vector<1x1xf32>
    %176 = vector.broadcast %175 : vector<1x1xf32> to vector<1x6xf32>
    %177 = arith.select %174, %176, %122 : vector<1x6xi1>, vector<1x6xf32>
    %c2_i32_58 = arith.constant 2 : i32
    %178 = vector.broadcast %c2_i32_58 : i32 to vector<1x6xi32>
    %179 = arith.cmpi eq, %7, %178 : vector<1x6xi32>
    %180 = vector.shape_cast %160 : vector<1x1xf32> to vector<1x1xf32>
    %181 = vector.broadcast %180 : vector<1x1xf32> to vector<1x6xf32>
    %182 = arith.select %179, %181, %127 : vector<1x6xi1>, vector<1x6xf32>
    %183 = arith.truncf %139 : vector<8x32xf32> to vector<8x32xbf16>
    %c3 = arith.constant 3 : index
    %c0_59 = arith.constant 0 : index
    %c0_60 = arith.constant 0 : index
    %184 = vector.load %arg6[%c3, %c0_59, %c0_60] : memref<5x32x40xbf16, #tpu.memory_space<vmem>>, vector<1x32x40xbf16>
    %185 = vector.shape_cast %184 : vector<1x32x40xbf16> to vector<32x40xbf16>
    %cst_61 = arith.constant dense<0.000000e+00> : vector<8x40xf32>
    %186 = tpu.matmul %183, %185, %cst_61 {dimension_numbers = #tpu.dot_dimension_numbers<[1], [0], [0], [1], [0, 0, 1, 1], [], []>} : vector<8x32xbf16>, vector<32x40xbf16>, vector<8x40xf32> -> vector<8x40xf32>
    %c3_62 = arith.constant 3 : index
    %c0_63 = arith.constant 0 : index
    %c0_64 = arith.constant 0 : index
    %187 = vector.load %arg7[%c3_62, %c0_63, %c0_64] : memref<5x1x40xf32, #tpu.memory_space<vmem>>, vector<1x1x40xf32>
    %188 = vector.shape_cast %187 : vector<1x1x40xf32> to vector<1x40xf32>
    %189 = vector.broadcast %188 : vector<1x40xf32> to vector<8x40xf32>
    %190 = arith.addf %186, %189 : vector<8x40xf32>
    %191 = vector.extract_strided_slice %190 {offsets = [0, 0], sizes = [8, 8], strides = [1, 1]} : vector<8x40xf32> to vector<8x8xf32>
    %192 = vector.extract_strided_slice %190 {offsets = [0, 8], sizes = [8, 32], strides = [1, 1]} : vector<8x40xf32> to vector<8x32xf32>
    %cst_65 = arith.constant 0.000000e+00 : f32
    %193 = vector.broadcast %cst_65 : f32 to vector<8x32xf32>
    %194 = arith.maximumf %192, %193 : vector<8x32xf32>
    %cst_66 = arith.constant dense<0xFF800000> : vector<8xf32>
    %195 = vector.multi_reduction <maximumf>, %191, %cst_66 [1] : vector<8x8xf32> to vector<8xf32>
    %196 = vector.shape_cast %195 : vector<8xf32> to vector<8x1xf32>
    %197 = vector.broadcast %196 : vector<8x1xf32> to vector<8x8xf32>
    %198 = arith.subf %191, %197 : vector<8x8xf32>
    %199 = math.exp %198 : vector<8x8xf32>
    %cst_67 = arith.constant dense<0.000000e+00> : vector<8xf32>
    %200 = vector.multi_reduction <add>, %199, %cst_67 [1] : vector<8x8xf32> to vector<8xf32>
    %201 = vector.shape_cast %200 : vector<8xf32> to vector<8x1xf32>
    %202 = math.log %201 : vector<8x1xf32>
    %203 = tpu.reciprocal %201 : vector<8x1xf32> -> vector<8x1xf32>
    %204 = arith.mulf %199, %198 : vector<8x8xf32>
    %cst_68 = arith.constant dense<0.000000e+00> : vector<8xf32>
    %205 = vector.multi_reduction <add>, %204, %cst_68 [1] : vector<8x8xf32> to vector<8xf32>
    %206 = vector.shape_cast %205 : vector<8xf32> to vector<8x1xf32>
    %207 = arith.mulf %206, %203 : vector<8x1xf32>
    %208 = arith.subf %207, %202 : vector<8x1xf32>
    %209 = vector.shape_cast %208 : vector<8x1xf32> to vector<1x8x1xf32>
    %cst_69 = arith.constant dense<0.000000e+00> : vector<1xf32>
    %210 = vector.multi_reduction <add>, %209, %cst_69 [1, 2] : vector<1x8x1xf32> to vector<1xf32>
    %211 = vector.shape_cast %210 : vector<1xf32> to vector<1x1x1xf32>
    %212 = vector.extract %211[0, 0, 0] : f32 from vector<1x1x1xf32>
    %213 = vector.broadcast %212 : f32 to vector<1x1xf32>
    %cst_70 = arith.constant 1.250000e-01 : f32
    %214 = vector.broadcast %cst_70 : f32 to vector<1x1xf32>
    %215 = arith.mulf %213, %214 : vector<1x1xf32>
    %216 = arith.mulf %6, %191 : vector<8x8xf32>
    %cst_71 = arith.constant dense<0.000000e+00> : vector<8xf32>
    %217 = vector.multi_reduction <add>, %216, %cst_71 [1] : vector<8x8xf32> to vector<8xf32>
    %218 = vector.shape_cast %217 : vector<8xf32> to vector<8x1xf32>
    %219 = arith.addf %202, %196 : vector<8x1xf32>
    %220 = arith.subf %219, %218 : vector<8x1xf32>
    %221 = vector.shape_cast %220 : vector<8x1xf32> to vector<1x8x1xf32>
    %cst_72 = arith.constant dense<0.000000e+00> : vector<1xf32>
    %222 = vector.multi_reduction <add>, %221, %cst_72 [1, 2] : vector<1x8x1xf32> to vector<1xf32>
    %223 = vector.shape_cast %222 : vector<1xf32> to vector<1x1x1xf32>
    %224 = vector.extract %223[0, 0, 0] : f32 from vector<1x1x1xf32>
    %225 = vector.broadcast %224 : f32 to vector<1x1xf32>
    %cst_73 = arith.constant 1.250000e-01 : f32
    %226 = vector.broadcast %cst_73 : f32 to vector<1x1xf32>
    %227 = arith.mulf %225, %226 : vector<1x1xf32>
    %c3_i32 = arith.constant 3 : i32
    %228 = vector.broadcast %c3_i32 : i32 to vector<1x6xi32>
    %229 = arith.cmpi eq, %7, %228 : vector<1x6xi32>
    %230 = vector.shape_cast %227 : vector<1x1xf32> to vector<1x1xf32>
    %231 = vector.broadcast %230 : vector<1x1xf32> to vector<1x6xf32>
    %232 = arith.select %229, %231, %177 : vector<1x6xi1>, vector<1x6xf32>
    %c3_i32_74 = arith.constant 3 : i32
    %233 = vector.broadcast %c3_i32_74 : i32 to vector<1x6xi32>
    %234 = arith.cmpi eq, %7, %233 : vector<1x6xi32>
    %235 = vector.shape_cast %215 : vector<1x1xf32> to vector<1x1xf32>
    %236 = vector.broadcast %235 : vector<1x1xf32> to vector<1x6xf32>
    %237 = arith.select %234, %236, %182 : vector<1x6xi1>, vector<1x6xf32>
    %238 = arith.truncf %194 : vector<8x32xf32> to vector<8x32xbf16>
    %c4 = arith.constant 4 : index
    %c0_75 = arith.constant 0 : index
    %c0_76 = arith.constant 0 : index
    %239 = vector.load %arg6[%c4, %c0_75, %c0_76] : memref<5x32x40xbf16, #tpu.memory_space<vmem>>, vector<1x32x40xbf16>
    %240 = vector.shape_cast %239 : vector<1x32x40xbf16> to vector<32x40xbf16>
    %cst_77 = arith.constant dense<0.000000e+00> : vector<8x40xf32>
    %241 = tpu.matmul %238, %240, %cst_77 {dimension_numbers = #tpu.dot_dimension_numbers<[1], [0], [0], [1], [0, 0, 1, 1], [], []>} : vector<8x32xbf16>, vector<32x40xbf16>, vector<8x40xf32> -> vector<8x40xf32>
    %c4_78 = arith.constant 4 : index
    %c0_79 = arith.constant 0 : index
    %c0_80 = arith.constant 0 : index
    %242 = vector.load %arg7[%c4_78, %c0_79, %c0_80] : memref<5x1x40xf32, #tpu.memory_space<vmem>>, vector<1x1x40xf32>
    %243 = vector.shape_cast %242 : vector<1x1x40xf32> to vector<1x40xf32>
    %244 = vector.broadcast %243 : vector<1x40xf32> to vector<8x40xf32>
    %245 = arith.addf %241, %244 : vector<8x40xf32>
    %246 = vector.extract_strided_slice %245 {offsets = [0, 0], sizes = [8, 8], strides = [1, 1]} : vector<8x40xf32> to vector<8x8xf32>
    %247 = vector.extract_strided_slice %245 {offsets = [0, 8], sizes = [8, 32], strides = [1, 1]} : vector<8x40xf32> to vector<8x32xf32>
    %cst_81 = arith.constant 0.000000e+00 : f32
    %248 = vector.broadcast %cst_81 : f32 to vector<8x32xf32>
    %249 = arith.maximumf %247, %248 : vector<8x32xf32>
    %cst_82 = arith.constant dense<0xFF800000> : vector<8xf32>
    %250 = vector.multi_reduction <maximumf>, %246, %cst_82 [1] : vector<8x8xf32> to vector<8xf32>
    %251 = vector.shape_cast %250 : vector<8xf32> to vector<8x1xf32>
    %252 = vector.broadcast %251 : vector<8x1xf32> to vector<8x8xf32>
    %253 = arith.subf %246, %252 : vector<8x8xf32>
    %254 = math.exp %253 : vector<8x8xf32>
    %cst_83 = arith.constant dense<0.000000e+00> : vector<8xf32>
    %255 = vector.multi_reduction <add>, %254, %cst_83 [1] : vector<8x8xf32> to vector<8xf32>
    %256 = vector.shape_cast %255 : vector<8xf32> to vector<8x1xf32>
    %257 = math.log %256 : vector<8x1xf32>
    %258 = tpu.reciprocal %256 : vector<8x1xf32> -> vector<8x1xf32>
    %259 = arith.mulf %254, %253 : vector<8x8xf32>
    %cst_84 = arith.constant dense<0.000000e+00> : vector<8xf32>
    %260 = vector.multi_reduction <add>, %259, %cst_84 [1] : vector<8x8xf32> to vector<8xf32>
    %261 = vector.shape_cast %260 : vector<8xf32> to vector<8x1xf32>
    %262 = arith.mulf %261, %258 : vector<8x1xf32>
    %263 = arith.subf %262, %257 : vector<8x1xf32>
    %264 = vector.shape_cast %263 : vector<8x1xf32> to vector<1x8x1xf32>
    %cst_85 = arith.constant dense<0.000000e+00> : vector<1xf32>
    %265 = vector.multi_reduction <add>, %264, %cst_85 [1, 2] : vector<1x8x1xf32> to vector<1xf32>
    %266 = vector.shape_cast %265 : vector<1xf32> to vector<1x1x1xf32>
    %267 = vector.extract %266[0, 0, 0] : f32 from vector<1x1x1xf32>
    %268 = vector.broadcast %267 : f32 to vector<1x1xf32>
    %cst_86 = arith.constant 1.250000e-01 : f32
    %269 = vector.broadcast %cst_86 : f32 to vector<1x1xf32>
    %270 = arith.mulf %268, %269 : vector<1x1xf32>
    %271 = arith.mulf %6, %246 : vector<8x8xf32>
    %cst_87 = arith.constant dense<0.000000e+00> : vector<8xf32>
    %272 = vector.multi_reduction <add>, %271, %cst_87 [1] : vector<8x8xf32> to vector<8xf32>
    %273 = vector.shape_cast %272 : vector<8xf32> to vector<8x1xf32>
    %274 = arith.addf %257, %251 : vector<8x1xf32>
    %275 = arith.subf %274, %273 : vector<8x1xf32>
    %276 = vector.shape_cast %275 : vector<8x1xf32> to vector<1x8x1xf32>
    %cst_88 = arith.constant dense<0.000000e+00> : vector<1xf32>
    %277 = vector.multi_reduction <add>, %276, %cst_88 [1, 2] : vector<1x8x1xf32> to vector<1xf32>
    %278 = vector.shape_cast %277 : vector<1xf32> to vector<1x1x1xf32>
    %279 = vector.extract %278[0, 0, 0] : f32 from vector<1x1x1xf32>
    %280 = vector.broadcast %279 : f32 to vector<1x1xf32>
    %cst_89 = arith.constant 1.250000e-01 : f32
    %281 = vector.broadcast %cst_89 : f32 to vector<1x1xf32>
    %282 = arith.mulf %280, %281 : vector<1x1xf32>
    %c4_i32 = arith.constant 4 : i32
    %283 = vector.broadcast %c4_i32 : i32 to vector<1x6xi32>
    %284 = arith.cmpi eq, %7, %283 : vector<1x6xi32>
    %285 = vector.shape_cast %282 : vector<1x1xf32> to vector<1x1xf32>
    %286 = vector.broadcast %285 : vector<1x1xf32> to vector<1x6xf32>
    %287 = arith.select %284, %286, %232 : vector<1x6xi1>, vector<1x6xf32>
    %c4_i32_90 = arith.constant 4 : i32
    %288 = vector.broadcast %c4_i32_90 : i32 to vector<1x6xi32>
    %289 = arith.cmpi eq, %7, %288 : vector<1x6xi32>
    %290 = vector.shape_cast %270 : vector<1x1xf32> to vector<1x1xf32>
    %291 = vector.broadcast %290 : vector<1x1xf32> to vector<1x6xf32>
    %292 = arith.select %289, %291, %237 : vector<1x6xi1>, vector<1x6xf32>
    %293 = arith.truncf %249 : vector<8x32xf32> to vector<8x32xbf16>
    %c0_91 = arith.constant 0 : index
    %c0_92 = arith.constant 0 : index
    %294 = vector.load %arg8[%c0_91, %c0_92] : memref<32x8xbf16, #tpu.memory_space<vmem>>, vector<32x8xbf16>
    %cst_93 = arith.constant dense<0.000000e+00> : vector<8x8xf32>
    %295 = tpu.matmul %293, %294, %cst_93 {dimension_numbers = #tpu.dot_dimension_numbers<[1], [0], [0], [1], [0, 0, 1, 1], [], []>} : vector<8x32xbf16>, vector<32x8xbf16>, vector<8x8xf32> -> vector<8x8xf32>
    %c0_94 = arith.constant 0 : index
    %c0_95 = arith.constant 0 : index
    %296 = vector.load %arg9[%c0_94, %c0_95] : memref<1x8xf32, #tpu.memory_space<vmem>>, vector<1x8xf32>
    %297 = vector.broadcast %296 : vector<1x8xf32> to vector<8x8xf32>
    %298 = arith.addf %295, %297 : vector<8x8xf32>
    %cst_96 = arith.constant dense<0xFF800000> : vector<8xf32>
    %299 = vector.multi_reduction <maximumf>, %298, %cst_96 [1] : vector<8x8xf32> to vector<8xf32>
    %300 = vector.shape_cast %299 : vector<8xf32> to vector<8x1xf32>
    %301 = vector.broadcast %300 : vector<8x1xf32> to vector<8x8xf32>
    %302 = arith.subf %298, %301 : vector<8x8xf32>
    %303 = math.exp %302 : vector<8x8xf32>
    %cst_97 = arith.constant dense<0.000000e+00> : vector<8xf32>
    %304 = vector.multi_reduction <add>, %303, %cst_97 [1] : vector<8x8xf32> to vector<8xf32>
    %305 = vector.shape_cast %304 : vector<8xf32> to vector<8x1xf32>
    %306 = math.log %305 : vector<8x1xf32>
    %307 = tpu.reciprocal %305 : vector<8x1xf32> -> vector<8x1xf32>
    %308 = arith.mulf %303, %302 : vector<8x8xf32>
    %cst_98 = arith.constant dense<0.000000e+00> : vector<8xf32>
    %309 = vector.multi_reduction <add>, %308, %cst_98 [1] : vector<8x8xf32> to vector<8xf32>
    %310 = vector.shape_cast %309 : vector<8xf32> to vector<8x1xf32>
    %311 = arith.mulf %310, %307 : vector<8x1xf32>
    %312 = arith.subf %311, %306 : vector<8x1xf32>
    %313 = vector.shape_cast %312 : vector<8x1xf32> to vector<1x8x1xf32>
    %cst_99 = arith.constant dense<0.000000e+00> : vector<1xf32>
    %314 = vector.multi_reduction <add>, %313, %cst_99 [1, 2] : vector<1x8x1xf32> to vector<1xf32>
    %315 = vector.shape_cast %314 : vector<1xf32> to vector<1x1x1xf32>
    %316 = vector.extract %315[0, 0, 0] : f32 from vector<1x1x1xf32>
    %317 = vector.broadcast %316 : f32 to vector<1x1xf32>
    %cst_100 = arith.constant 1.250000e-01 : f32
    %318 = vector.broadcast %cst_100 : f32 to vector<1x1xf32>
    %319 = arith.mulf %317, %318 : vector<1x1xf32>
    %320 = arith.mulf %6, %298 : vector<8x8xf32>
    %cst_101 = arith.constant dense<0.000000e+00> : vector<8xf32>
    %321 = vector.multi_reduction <add>, %320, %cst_101 [1] : vector<8x8xf32> to vector<8xf32>
    %322 = vector.shape_cast %321 : vector<8xf32> to vector<8x1xf32>
    %323 = arith.addf %306, %300 : vector<8x1xf32>
    %324 = arith.subf %323, %322 : vector<8x1xf32>
    %325 = vector.shape_cast %324 : vector<8x1xf32> to vector<1x8x1xf32>
    %cst_102 = arith.constant dense<0.000000e+00> : vector<1xf32>
    %326 = vector.multi_reduction <add>, %325, %cst_102 [1, 2] : vector<1x8x1xf32> to vector<1xf32>
    %327 = vector.shape_cast %326 : vector<1xf32> to vector<1x1x1xf32>
    %328 = vector.extract %327[0, 0, 0] : f32 from vector<1x1x1xf32>
    %329 = vector.broadcast %328 : f32 to vector<1x1xf32>
    %cst_103 = arith.constant 1.250000e-01 : f32
    %330 = vector.broadcast %cst_103 : f32 to vector<1x1xf32>
    %331 = arith.mulf %329, %330 : vector<1x1xf32>
    %c5_i32 = arith.constant 5 : i32
    %332 = vector.broadcast %c5_i32 : i32 to vector<1x6xi32>
    %333 = arith.cmpi eq, %7, %332 : vector<1x6xi32>
    %334 = vector.shape_cast %331 : vector<1x1xf32> to vector<1x1xf32>
    %335 = vector.broadcast %334 : vector<1x1xf32> to vector<1x6xf32>
    %336 = arith.select %333, %335, %287 : vector<1x6xi1>, vector<1x6xf32>
    %c5_i32_104 = arith.constant 5 : i32
    %337 = vector.broadcast %c5_i32_104 : i32 to vector<1x6xi32>
    %338 = arith.cmpi eq, %7, %337 : vector<1x6xi32>
    %339 = vector.shape_cast %319 : vector<1x1xf32> to vector<1x1xf32>
    %340 = vector.broadcast %339 : vector<1x1xf32> to vector<1x6xf32>
    %341 = arith.select %338, %340, %292 : vector<1x6xi1>, vector<1x6xf32>
    %c0_105 = arith.constant 0 : index
    %c0_106 = arith.constant 0 : index
    %342 = vector.load %arg2[%c0_105, %c0_106] : memref<1x6xf32, #tpu.memory_space<vmem>>, vector<1x6xf32>
    %343 = arith.mulf %336, %342 : vector<1x6xf32>
    %c0_107 = arith.constant 0 : index
    %c0_108 = arith.constant 0 : index
    %344 = vector.load %arg3[%c0_107, %c0_108] : memref<1x6xf32, #tpu.memory_space<vmem>>, vector<1x6xf32>
    %345 = arith.addf %343, %344 : vector<1x6xf32>
    %cst_109 = arith.constant dense<0.000000e+00> : vector<1xf32>
    %346 = vector.multi_reduction <add>, %345, %cst_109 [1] : vector<1x6xf32> to vector<1xf32>
    %347 = vector.shape_cast %346 : vector<1xf32> to vector<1x1xf32>
    %cst_110 = arith.constant 0.166666672 : f32
    %348 = vector.broadcast %cst_110 : f32 to vector<1x1xf32>
    %349 = arith.mulf %347, %348 : vector<1x1xf32>
    %c0_111 = arith.constant 0 : index
    %c0_112 = arith.constant 0 : index
    %350 = vector.load %arg10[%c0_111, %c0_112] : memref<1x1xf32, #tpu.memory_space<vmem>>, vector<1x1xf32>
    tpu.vector_store %arg10[%c0_111, %c0_112], %349 {strides = array<i32>} : memref<1x1xf32, #tpu.memory_space<vmem>>, vector<1x1xf32>,
    %c0_113 = arith.constant 0 : index
    %c0_114 = arith.constant 0 : index
    %351 = vector.load %arg11[%c0_113, %c0_114] : memref<1x6xf32, #tpu.memory_space<vmem>>, vector<1x6xf32>
    tpu.vector_store %arg11[%c0_113, %c0_114], %341 {strides = array<i32>} : memref<1x6xf32, #tpu.memory_space<vmem>>, vector<1x6xf32>,
    return
  }
}

</mosaic_0001>

<llo_original>
// kernel: tpu_custom_call.1
$region0: #{tpu_custom_call.1}
  #allocation0 [shape = 'u32[]', space=smem, size = 0x4, offset = 0x4, fixed_abs, tag = 'smem constant byte address 0x4 - core index']
  #allocation1 [shape = 'u32[144,128]{1,0:T(1,128)}', space=vmem, size = 0x12000, scoped, tag = 'internal scratch']
  %s0 = inlined_call_operand.vmem [shape: f32[8,32], index: 0, kind: input, shape index: {}]
  %s1 = inlined_call_operand.vmem [shape: s32[8,1], index: 1, kind: input, shape index: {}]
  %s2 = inlined_call_operand.vmem [shape: f32[1,6], index: 2, kind: input, shape index: {}]
  %s3 = inlined_call_operand.vmem [shape: f32[1,6], index: 3, kind: input, shape index: {}]
  %s4 = inlined_call_operand.vmem [shape: bf16[32,32], index: 4, kind: input, shape index: {}]
  %s5 = inlined_call_operand.vmem [shape: f32[1,32], index: 5, kind: input, shape index: {}]
  %s6 = inlined_call_operand.hbm [shape: bf16[5,32,40], index: 6, kind: input, shape index: {}]
  %s7 = inlined_call_operand.vmem [shape: f32[5,1,40], index: 7, kind: input, shape index: {}]
  %s8 = inlined_call_operand.vmem [shape: bf16[32,8], index: 8, kind: input, shape index: {}]
  %s9 = inlined_call_operand.vmem [shape: f32[1,8], index: 9, kind: input, shape index: {}]
  %s10 = inlined_call_operand.hbm [shape: f32[1,1], index: 10, kind: output, shape index: {0}]
  %s11 = inlined_call_operand.hbm [shape: f32[1,6], index: 11, kind: output, shape index: {1}]
  %12 = xla_tuple %s10, %s11
  %s13 = sld [smem:[#allocation0]]
  $region62: #{tpu_custom_call.1} parent=0
    _
  %s15 = ssub.s32 1, %s13
  %s16 = scalar_select 0, %s15, %s13
  $region1: #{tpu_custom_call.1} parent=0
    #allocation2 [shape = 'u8[40960]{0}', space=vmem, size = 0xa000, scoped, tag = 'input window, operand 6, single buffered']
    #allocation3 [shape = 's32[1]{0}', space=sflag, size = 0x4, scoped, tag = 'scoped memory for tpu_custom_call.1']
    #allocation4 [shape = 's32[1]{0}', space=sflag, size = 0x4, scoped, tag = 'scoped memory for tpu_custom_call.1']
    #allocation5 [shape = 'u8[512]{0}', space=vmem, size = 0x400, scoped, tag = 'output window, operand 0, single buffered']
    #allocation6 [shape = 'u8[512]{0}', space=vmem, size = 0x400, scoped, tag = 'output window, operand 1, single buffered']
    #allocation7 [shape = 's32[1]{0}', space=sflag, size = 0x4, scoped, tag = 'scoped memory for tpu_custom_call.1']
    %17 = vsyncpa [#allocation3], 0
    %18 = vsyncpa [#allocation4], 0
    %19 = vsyncpa [#allocation7], 0
    // Predicated region
    $region2: #{tpu_custom_call.1} parent=1 // pred_check
      _
    $region3: #{tpu_custom_call.1} parent=1 // pred_check_branch
      %21 = sbr.rel (0) target = $region5
    $region4: #{tpu_custom_call.1} parent=1 // pred_region
      _
    $region5: #{tpu_custom_call.1} parent=1 // pred_fallthru
      _
    // Predicated region
    $region6: #{tpu_custom_call.1} parent=1 // pred_check
      _
    $region7: #{tpu_custom_call.1} parent=1 // pred_check_branch
      %23 = sbr.rel (0) target = $region9
    $region8: #{tpu_custom_call.1} parent=1 // pred_region
      _
    $region9: #{tpu_custom_call.1} parent=1 // pred_fallthru
      _
    // Predicated region
    $region10: #{tpu_custom_call.1} parent=1 // pred_check
      _
    $region11: #{tpu_custom_call.1} parent=1 // pred_check_branch
      %25 = sbr.rel (0) target = $region13
    $region12: #{tpu_custom_call.1} parent=1 // pred_region
      _
    $region13: #{tpu_custom_call.1} parent=1 // pred_fallthru
      _
    // Predicated region
    $region14: #{tpu_custom_call.1} parent=1 // pred_check
      _
    $region15: #{tpu_custom_call.1} parent=1 // pred_check_branch
      %27 = sbr.rel (0) target = $region17
    $region16: #{tpu_custom_call.1} parent=1 // pred_region
      _
    $region17: #{tpu_custom_call.1} parent=1 // pred_fallthru
      _
    // Predicated region
    $region18: #{tpu_custom_call.1} parent=1 // pred_check
      _
    $region19: #{tpu_custom_call.1} parent=1 // pred_check_branch
      %29 = sbr.rel (0) target = $region21
    $region20: #{tpu_custom_call.1} parent=1 // pred_region
      _
    $region21: #{tpu_custom_call.1} parent=1 // pred_fallthru
      _
    // Predicated region
    $region22: #{tpu_custom_call.1} parent=1 // pred_check
      _
    $region23: #{tpu_custom_call.1} parent=1 // pred_check_branch
      %31 = sbr.rel (0) target = $region25
    $region24: #{tpu_custom_call.1} parent=1 // pred_region
      _
    $region25: #{tpu_custom_call.1} parent=1 // pred_fallthru
      _
    // Predicated region
    $region26: #{tpu_custom_call.1} parent=1 // pred_check
      _
    $region27: #{tpu_custom_call.1} parent=1 // pred_check_branch
      %33 = sbr.rel (0) target = $region29
    $region28: #{tpu_custom_call.1} parent=1 // pred_region
      %s35 = ssub.s32 1280, 1280
      %36 = vsyncadd [#allocation3], %s35
      %s37 = sshll.u32 [#allocation2], 4
      %s38 = int_to_ptr.vmem [resolvable:$true] %s37
      %43 = dma.hbm_to_vmem [thread:$0]  %s6, 1280, %s38, [#allocation3], 64, 64, 4
    $region29: #{tpu_custom_call.1} parent=1 // pred_fallthru
      _
    // Predicated region
    $region30: #{tpu_custom_call.1} parent=1 // pred_check
      _
    $region31: #{tpu_custom_call.1} parent=1 // pred_check_branch
      %45 = sbr.rel (0) target = $region33
    $region32: #{tpu_custom_call.1} parent=1 // pred_region
      _
    $region33: #{tpu_custom_call.1} parent=1 // pred_fallthru
      _
    // Predicated region
    $region34: #{tpu_custom_call.1} parent=1 // pred_check
      _
    $region35: #{tpu_custom_call.1} parent=1 // pred_check_branch
      %47 = sbr.rel (0) target = $region37
    $region36: #{tpu_custom_call.1} parent=1 // pred_region
      _
    $region37: #{tpu_custom_call.1} parent=1 // pred_fallthru
      _
    // Predicated region
    $region38: #{tpu_custom_call.1} parent=1 // pred_check
      _
    $region39: #{tpu_custom_call.1} parent=1 // pred_check_branch
      %49 = sbr.rel (0) target = $region41
    $region40: #{tpu_custom_call.1} parent=1 // pred_region
      _
    $region41: #{tpu_custom_call.1} parent=1 // pred_fallthru
      _
    // Predicated region
    $region42: #{tpu_custom_call.1} parent=1 // pred_check
      _
    $region43: #{tpu_custom_call.1} parent=1 // pred_check_branch
      %51 = sbr.rel (0) target = $region45
    $region44: #{tpu_custom_call.1} parent=1 // pred_region
      %52 = dma.done [#allocation3], 1280
    $region45: #{tpu_custom_call.1} parent=1 // pred_fallthru
      _
    %v54 = vld [vmem:[%s0] sm:$0xff]
    %v55 = vld [vmem:[%s1] sm:$0xff]
    %v56 = vlaneseq
    %v57 = vand.u32 %v56, 127
    %58 = vset.pattern.permute.xlu0 0
    %59 = vperm.xlu0 %58, %v55
    %v60 = vpop.permute.xlu0 %59
    %vm61 = vcmp.eq.s32.totalorder %v57, %v60
    %v62 = vsel %vm61, 1, 0
    %v63 = vcvt.s32.f32 %v62
    %v64 = vpack.c.bf16 %v54, %v54
    %v65 = vld [vmem:[%s4] sm:$0xf]
    %v66 = vld [vmem:[%s4 + $0x4] sm:$0xf]
    %v67 = vld [vmem:[%s4 + $0x8] sm:$0xf]
    %v68 = vld [vmem:[%s4 + $0xc] sm:$0xf]
    %v69 = vld [vmem:[%s5] sm:$0x1]
    %v71 = vlaneseq
    %v72 = vshrl.u32 %v71, 7
    %v73 = vsub.s32 0, %v72
    %v74 = vrot.slane %v69, %v73
    %v80 = vunpack.c.l.b16 %v65
    %v81 = vunpack.c.l.b16 %v66
    %v82 = vunpack.c.l.b16 %v67
    %v83 = vunpack.c.l.b16 %v68
    %v84 = vpack.c.b16 %v81, %v80
    %v85 = vpack.c.b16 %v83, %v82
    %vm88 = vcmask 261120
    %v90 = vsel %vm88, %v64, 0
    %92 = vmatprep.subr.bf16.mxu0 0
    %93 = vmatpush1.bf16.msra.mxu0 %v84
    %94 = vmatprep.subr.bf16.mxu0 0
    %95 = vmatpush1.bf16.msra.mxu0 %v85
    %96 = vmatprep.subr.bf16.mxu0 0
    %97 = vmatpush1.bf16.msra.mxu0 0
    %98 = vmatprep.subr.bf16.mxu0 0
    %99 = vmatpush1.bf16.msra.mxu0 0
    %100 = vmatprep.subr.bf16.mxu0 0
    %101 = vmatpush1.bf16.msra.mxu0 0
    %102 = vmatprep.subr.bf16.mxu0 0
    %103 = vmatpush1.bf16.msra.mxu0 0
    %104 = vmatprep.subr.bf16.mxu0 0
    %105 = vmatpush1.bf16.msra.mxu0 0
    %106 = vmatprep.subr.bf16.mxu0 0
    %107 = vmatpush1.bf16.msra.mxu0 0
    %108 = vmatprep.subr.bf16.mxu0 0
    %109 = vmatpush1.bf16.msra.mxu0 0
    %110 = vmatprep.subr.bf16.mxu0 0
    %111 = vmatpush1.bf16.msra.mxu0 0
    %112 = vmatprep.subr.bf16.mxu0 0
    %113 = vmatpush1.bf16.msra.mxu0 0
    %114 = vmatprep.subr.bf16.mxu0 0
    %115 = vmatpush1.bf16.msra.mxu0 0
    %116 = vmatprep.subr.bf16.mxu0 0
    %117 = vmatpush1.bf16.msra.mxu0 0
    %118 = vmatprep.subr.bf16.mxu0 0
    %119 = vmatpush1.bf16.msra.mxu0 0
    %120 = vmatprep.subr.bf16.mxu0 0
    %121 = vmatpush1.bf16.msra.mxu0 0
    %122 = vmatprep.subr.bf16.mxu0 0
    %123 = vmatpush1.bf16.msra.mxu0 0
    %124 = vmatprep.mubr.bf16.mxu0 0
    %125 = vmatmul.mubr.bf16.gmra.mrb[0].mxu0 %v90
    %v126 = vpop.f32.mrb[0].mxu0
    %v127 = vadd.f32 %v74, %v126
    %v128 = vpop.f32.mrb[0].mxu0
    %v129 = vpop.f32.mrb[0].mxu0
    %v130 = vpop.f32.mrb[0].mxu0
    %131 = vdwg.mxu0
    %v132 = vmax.f32 %v127, 0.0
    %v133 = vpack.c.bf16 %v132, %v132
    %v134 = vld [vmem:[#allocation2] sm:$0xf]
    %v135 = vld [vmem:[#allocation2 + $0x4] sm:$0xf]
    %v136 = vld [vmem:[#allocation2 + $0x8] sm:$0xf]
    %v137 = vld [vmem:[#allocation2 + $0xc] sm:$0xf]
    %v138 = vld [vmem:[%s7] sm:$0x1]
    %v140 = vlaneseq
    %v141 = vshrl.u32 %v140, 7
    %v142 = vsub.s32 0, %v141
    %v143 = vrot.slane %v138, %v142
    %v149 = vunpack.c.l.b16 %v134
    %v150 = vunpack.c.l.b16 %v135
    %v151 = vunpack.c.l.b16 %v136
    %v152 = vunpack.c.l.b16 %v137
    %v153 = vpack.c.b16 %v150, %v149
    %v154 = vpack.c.b16 %v152, %v151
    %v158 = vsel %vm88, %v133, 0
    %160 = vmatprep.subr.bf16.mxu0 0
    %161 = vmatpush1.bf16.msra.mxu0 %v153
    %162 = vmatprep.subr.bf16.mxu0 0
    %163 = vmatpush1.bf16.msra.mxu0 %v154
    %164 = vmatprep.subr.bf16.mxu0 0
    %165 = vmatpush1.bf16.msra.mxu0 0
    %166 = vmatprep.subr.bf16.mxu0 0
    %167 = vmatpush1.bf16.msra.mxu0 0
    %168 = vmatprep.subr.bf16.mxu0 0
    %169 = vmatpush1.bf16.msra.mxu0 0
    %170 = vmatprep.subr.bf16.mxu0 0
    %171 = vmatpush1.bf16.msra.mxu0 0
    %172 = vmatprep.subr.bf16.mxu0 0
    %173 = vmatpush1.bf16.msra.mxu0 0
    %174 = vmatprep.subr.bf16.mxu0 0
    %175 = vmatpush1.bf16.msra.mxu0 0
    %176 = vmatprep.subr.bf16.mxu0 0
    %177 = vmatpush1.bf16.msra.mxu0 0
    %178 = vmatprep.subr.bf16.mxu0 0
    %179 = vmatpush1.bf16.msra.mxu0 0
    %180 = vmatprep.subr.bf16.mxu0 0
    %181 = vmatpush1.bf16.msra.mxu0 0
    %182 = vmatprep.subr.bf16.mxu0 0
    %183 = vmatpush1.bf16.msra.mxu0 0
    %184 = vmatprep.subr.bf16.mxu0 0
    %185 = vmatpush1.bf16.msra.mxu0 0
    %186 = vmatprep.subr.bf16.mxu0 0
    %187 = vmatpush1.bf16.msra.mxu0 0
    %188 = vmatprep.subr.bf16.mxu0 0
    %189 = vmatpush1.bf16.msra.mxu0 0
    %190 = vmatprep.subr.bf16.mxu0 0
    %191 = vmatpush1.bf16.msra.mxu0 0
    %192 = vmatprep.mubr.bf16.mxu0 0
    %193 = vmatmul.mubr.bf16.gmra.mrb[0].mxu0 %v158
    %v194 = vpop.f32.mrb[0].mxu0
    %v195 = vadd.f32 %v143, %v194
    %v196 = vpop.f32.mrb[0].mxu0
    %v197 = vpop.f32.mrb[0].mxu0
    %v198 = vpop.f32.mrb[0].mxu0
    %199 = vdwg.mxu0
    %v200 = vmax.f32 %v195, 0.0
    %vm201 = vcmask 64512
    %v202 = vsel %vm201, %v195, -inf
    %203 = vmax.xlane.f32.xlu0 %v202
    %v204 = vpop.xlane.xlu0 %203
    %v205 = vsub.f32 %v195, %v204
    %v206 = vmul.f32 %v205, 1.442695
    %v207 = vpow.pop %v206
    %v208 = vsel %vm201, %v207, 0.0
    %209 = vadd.xlane.f32.xlu0 %v208
    %v210 = vpop.xlane.xlu0 %209
    %v211 = vlog2.pop %v210
    %v212 = vmul.f32 %v211, 0.6931472
    %v213 = vrcp.pop %v210
    %v214 = vmul.f32 %v207, %v205
    %v215 = vsel %vm201, %v214, 0.0
    %216 = vadd.xlane.f32.xlu0 %v215
    %v217 = vpop.xlane.xlu0 %216
    %v218 = vmul.f32 %v217, %v213
    %v219 = vsub.f32 %v218, %v212
    %vm220 = vcmask 7168
    %v221 = vsel %vm220, %v219, 0.0
    %222 = vadd.xlane.f32.xlu0 %v221
    %v223 = vpop.xlane.xlu0 %222
    %v224 = vrot.slane %v223, 4
    %v225 = vadd.f32 %v223, %v224
    %v226 = vrot.slane %v225, 2
    %v227 = vadd.f32 %v225, %v226
    %v228 = vrot.slane %v227, 1
    %v229 = vadd.f32 %v227, %v228
    %s230 = vtos %v229
    %v231 = vstv %s230
    %v232 = vmul.f32 %v231, 0.125
    %v233 = vmul.f32 %v63, %v195
    %v234 = vsel %vm201, %v233, 0.0
    %235 = vadd.xlane.f32.xlu0 %v234
    %v236 = vpop.xlane.xlu0 %235
    %v237 = vadd.f32 %v212, %v204
    %v238 = vsub.f32 %v237, %v236
    %v239 = vsel %vm220, %v238, 0.0
    %240 = vadd.xlane.f32.xlu0 %v239
    %v241 = vpop.xlane.xlu0 %240
    %v242 = vrot.slane %v241, 4
    %v243 = vadd.f32 %v241, %v242
    %v244 = vrot.slane %v243, 2
    %v245 = vadd.f32 %v243, %v244
    %v246 = vrot.slane %v245, 1
    %v247 = vadd.f32 %v245, %v246
    %s248 = vtos %v247
    %v249 = vstv %s248
    %v250 = vmul.f32 %v249, 0.125
    %vm251 = vcmp.eq.s32.totalorder %v57, 0
    %v252 = vsel %vm251, %v250, 0.0
    %v253 = vsel %vm251, %v232, 0.0
    %v254 = vpack.c.bf16 %v200, %v200
    %s255 = scalar_lea.vmem [#allocation2], 16
    %v256 = vld [vmem:[%s255] sm:$0xf]
    %v257 = vld [vmem:[%s255 + $0x4] sm:$0xf]
    %v258 = vld [vmem:[%s255 + $0x8] sm:$0xf]
    %v259 = vld [vmem:[%s255 + $0xc] sm:$0xf]
    %s260 = scalar_lea.vmem %s7, 1
    %v261 = vld [vmem:[%s260] sm:$0x1]
    %v263 = vlaneseq
    %v264 = vshrl.u32 %v263, 7
    %v265 = vsub.s32 0, %v264
    %v266 = vrot.slane %v261, %v265
    %269 = vrot.lane.b32.xlu0 %v254, 120
    %v270 = vpop.permute.xlu0 %269
    %v275 = vunpack.c.l.b16 %v256
    %v276 = vunpack.c.l.b16 %v257
    %v277 = vunpack.c.l.b16 %v258
    %v278 = vunpack.c.l.b16 %v259
    %v279 = vpack.c.b16 %v276, %v275
    %v280 = vpack.c.b16 %v278, %v277
    %v284 = vsel %vm88, %v270, 0
    %286 = vmatprep.subr.bf16.mxu0 0
    %287 = vmatpush1.bf16.msra.mxu0 %v279
    %288 = vmatprep.subr.bf16.mxu0 0
    %289 = vmatpush1.bf16.msra.mxu0 %v280
    %290 = vmatprep.subr.bf16.mxu0 0
    %291 = vmatpush1.bf16.msra.mxu0 0
    %292 = vmatprep.subr.bf16.mxu0 0
    %293 = vmatpush1.bf16.msra.mxu0 0
    %294 = vmatprep.subr.bf16.mxu0 0
    %295 = vmatpush1.bf16.msra.mxu0 0
    %296 = vmatprep.subr.bf16.mxu0 0
    %297 = vmatpush1.bf16.msra.mxu0 0
    %298 = vmatprep.subr.bf16.mxu0 0
    %299 = vmatpush1.bf16.msra.mxu0 0
    %300 = vmatprep.subr.bf16.mxu0 0
    %301 = vmatpush1.bf16.msra.mxu0 0
    %302 = vmatprep.subr.bf16.mxu0 0
    %303 = vmatpush1.bf16.msra.mxu0 0
    %304 = vmatprep.subr.bf16.mxu0 0
    %305 = vmatpush1.bf16.msra.mxu0 0
    %306 = vmatprep.subr.bf16.mxu0 0
    %307 = vmatpush1.bf16.msra.mxu0 0
    %308 = vmatprep.subr.bf16.mxu0 0
    %309 = vmatpush1.bf16.msra.mxu0 0
    %310 = vmatprep.subr.bf16.mxu0 0
    %311 = vmatpush1.bf16.msra.mxu0 0
    %312 = vmatprep.subr.bf16.mxu0 0
    %313 = vmatpush1.bf16.msra.mxu0 0
    %314 = vmatprep.subr.bf16.mxu0 0
    %315 = vmatpush1.bf16.msra.mxu0 0
    %316 = vmatprep.subr.bf16.mxu0 0
    %317 = vmatpush1.bf16.msra.mxu0 0
    %318 = vmatprep.mubr.bf16.mxu0 0
    %319 = vmatmul.mubr.bf16.gmra.mrb[0].mxu0 %v284
    %v320 = vpop.f32.mrb[0].mxu0
    %v321 = vadd.f32 %v266, %v320
    %v322 = vpop.f32.mrb[0].mxu0
    %v323 = vpop.f32.mrb[0].mxu0
    %v324 = vpop.f32.mrb[0].mxu0
    %325 = vdwg.mxu0
    %v326 = vmax.f32 %v321, 0.0
    %v327 = vsel %vm201, %v321, -inf
    %328 = vmax.xlane.f32.xlu0 %v327
    %v329 = vpop.xlane.xlu0 %328
    %v330 = vsub.f32 %v321, %v329
    %v331 = vmul.f32 %v330, 1.442695
    %v332 = vpow.pop %v331
    %v333 = vsel %vm201, %v332, 0.0
    %334 = vadd.xlane.f32.xlu0 %v333
    %v335 = vpop.xlane.xlu0 %334
    %v336 = vlog2.pop %v335
    %v337 = vmul.f32 %v336, 0.6931472
    %v338 = vrcp.pop %v335
    %v339 = vmul.f32 %v332, %v330
    %v340 = vsel %vm201, %v339, 0.0
    %341 = vadd.xlane.f32.xlu0 %v340
    %v342 = vpop.xlane.xlu0 %341
    %v343 = vmul.f32 %v342, %v338
    %v344 = vsub.f32 %v343, %v337
    %v345 = vsel %vm220, %v344, 0.0
    %346 = vadd.xlane.f32.xlu0 %v345
    %v347 = vpop.xlane.xlu0 %346
    %v348 = vrot.slane %v347, 4
    %v349 = vadd.f32 %v347, %v348
    %v350 = vrot.slane %v349, 2
    %v351 = vadd.f32 %v349, %v350
    %v352 = vrot.slane %v351, 1
    %v353 = vadd.f32 %v351, %v352
    %s354 = vtos %v353
    %v355 = vstv %s354
    %v356 = vmul.f32 %v355, 0.125
    %v357 = vmul.f32 %v63, %v321
    %v358 = vsel %vm201, %v357, 0.0
    %359 = vadd.xlane.f32.xlu0 %v358
    %v360 = vpop.xlane.xlu0 %359
    %v361 = vadd.f32 %v337, %v329
    %v362 = vsub.f32 %v361, %v360
    %v363 = vsel %vm220, %v362, 0.0
    %364 = vadd.xlane.f32.xlu0 %v363
    %v365 = vpop.xlane.xlu0 %364
    %v366 = vrot.slane %v365, 4
    %v367 = vadd.f32 %v365, %v366
    %v368 = vrot.slane %v367, 2
    %v369 = vadd.f32 %v367, %v368
    %v370 = vrot.slane %v369, 1
    %v371 = vadd.f32 %v369, %v370
    %s372 = vtos %v371
    %v373 = vstv %s372
    %v374 = vmul.f32 %v373, 0.125
    %vm375 = vcmp.eq.s32.totalorder %v57, 1
    %v376 = vsel %vm375, %v374, %v252
    %v377 = vsel %vm375, %v356, %v253
    %v378 = vpack.c.bf16 %v326, %v326
    %s379 = scalar_lea.vmem [#allocation2], 32
    %v380 = vld [vmem:[%s379] sm:$0xf]
    %v381 = vld [vmem:[%s379 + $0x4] sm:$0xf]
    %v382 = vld [vmem:[%s379 + $0x8] sm:$0xf]
    %v383 = vld [vmem:[%s379 + $0xc] sm:$0xf]
    %s384 = scalar_lea.vmem %s7, 2
    %v385 = vld [vmem:[%s384] sm:$0x1]
    %v387 = vlaneseq
    %v388 = vshrl.u32 %v387, 7
    %v389 = vsub.s32 0, %v388
    %v390 = vrot.slane %v385, %v389
    %393 = vrot.lane.b32.xlu0 %v378, 120
    %v394 = vpop.permute.xlu0 %393
    %v399 = vunpack.c.l.b16 %v380
    %v400 = vunpack.c.l.b16 %v381
    %v401 = vunpack.c.l.b16 %v382
    %v402 = vunpack.c.l.b16 %v383
    %v403 = vpack.c.b16 %v400, %v399
    %v404 = vpack.c.b16 %v402, %v401
    %v408 = vsel %vm88, %v394, 0
    %410 = vmatprep.subr.bf16.mxu0 0
    %411 = vmatpush1.bf16.msra.mxu0 %v403
    %412 = vmatprep.subr.bf16.mxu0 0
    %413 = vmatpush1.bf16.msra.mxu0 %v404
    %414 = vmatprep.subr.bf16.mxu0 0
    %415 = vmatpush1.bf16.msra.mxu0 0
    %416 = vmatprep.subr.bf16.mxu0 0
    %417 = vmatpush1.bf16.msra.mxu0 0
    %418 = vmatprep.subr.bf16.mxu0 0
    %419 = vmatpush1.bf16.msra.mxu0 0
    %420 = vmatprep.subr.bf16.mxu0 0
    %421 = vmatpush1.bf16.msra.mxu0 0
    %422 = vmatprep.subr.bf16.mxu0 0
    %423 = vmatpush1.bf16.msra.mxu0 0
    %424 = vmatprep.subr.bf16.mxu0 0
    %425 = vmatpush1.bf16.msra.mxu0 0
    %426 = vmatprep.subr.bf16.mxu0 0
    %427 = vmatpush1.bf16.msra.mxu0 0
    %428 = vmatprep.subr.bf16.mxu0 0
    %429 = vmatpush1.bf16.msra.mxu0 0
    %430 = vmatprep.subr.bf16.mxu0 0
    %431 = vmatpush1.bf16.msra.mxu0 0
    %432 = vmatprep.subr.bf16.mxu0 0
    %433 = vmatpush1.bf16.msra.mxu0 0
    %434 = vmatprep.subr.bf16.mxu0 0
    %435 = vmatpush1.bf16.msra.mxu0 0
    %436 = vmatprep.subr.bf16.mxu0 0
    %437 = vmatpush1.bf16.msra.mxu0 0
    %438 = vmatprep.subr.bf16.mxu0 0
    %439 = vmatpush1.bf16.msra.mxu0 0
    %440 = vmatprep.subr.bf16.mxu0 0
    %441 = vmatpush1.bf16.msra.mxu0 0
    %442 = vmatprep.mubr.bf16.mxu0 0
    %443 = vmatmul.mubr.bf16.gmra.mrb[0].mxu0 %v408
    %v444 = vpop.f32.mrb[0].mxu0
    %v445 = vadd.f32 %v390, %v444
    %v446 = vpop.f32.mrb[0].mxu0
    %v447 = vpop.f32.mrb[0].mxu0
    %v448 = vpop.f32.mrb[0].mxu0
    %449 = vdwg.mxu0
    %v450 = vmax.f32 %v445, 0.0
    %v451 = vsel %vm201, %v445, -inf
    %452 = vmax.xlane.f32.xlu0 %v451
    %v453 = vpop.xlane.xlu0 %452
    %v454 = vsub.f32 %v445, %v453
    %v455 = vmul.f32 %v454, 1.442695
    %v456 = vpow.pop %v455
    %v457 = vsel %vm201, %v456, 0.0
    %458 = vadd.xlane.f32.xlu0 %v457
    %v459 = vpop.xlane.xlu0 %458
    %v460 = vlog2.pop %v459
    %v461 = vmul.f32 %v460, 0.6931472
    %v462 = vrcp.pop %v459
    %v463 = vmul.f32 %v456, %v454
    %v464 = vsel %vm201, %v463, 0.0
    %465 = vadd.xlane.f32.xlu0 %v464
    %v466 = vpop.xlane.xlu0 %465
    %v467 = vmul.f32 %v466, %v462
    %v468 = vsub.f32 %v467, %v461
    %v469 = vsel %vm220, %v468, 0.0
    %470 = vadd.xlane.f32.xlu0 %v469
    %v471 = vpop.xlane.xlu0 %470
    %v472 = vrot.slane %v471, 4
    %v473 = vadd.f32 %v471, %v472
    %v474 = vrot.slane %v473, 2
    %v475 = vadd.f32 %v473, %v474
    %v476 = vrot.slane %v475, 1
    %v477 = vadd.f32 %v475, %v476
    %s478 = vtos %v477
    %v479 = vstv %s478
    %v480 = vmul.f32 %v479, 0.125
    %v481 = vmul.f32 %v63, %v445
    %v482 = vsel %vm201, %v481, 0.0
    %483 = vadd.xlane.f32.xlu0 %v482
    %v484 = vpop.xlane.xlu0 %483
    %v485 = vadd.f32 %v461, %v453
    %v486 = vsub.f32 %v485, %v484
    %v487 = vsel %vm220, %v486, 0.0
    %488 = vadd.xlane.f32.xlu0 %v487
    %v489 = vpop.xlane.xlu0 %488
    %v490 = vrot.slane %v489, 4
    %v491 = vadd.f32 %v489, %v490
    %v492 = vrot.slane %v491, 2
    %v493 = vadd.f32 %v491, %v492
    %v494 = vrot.slane %v493, 1
    %v495 = vadd.f32 %v493, %v494
    %s496 = vtos %v495
    %v497 = vstv %s496
    %v498 = vmul.f32 %v497, 0.125
    %vm499 = vcmp.eq.s32.totalorder %v57, 2
    %v500 = vsel %vm499, %v498, %v376
    %v501 = vsel %vm499, %v480, %v377
    %v502 = vpack.c.bf16 %v450, %v450
    %s503 = scalar_lea.vmem [#allocation2], 48
    %v504 = vld [vmem:[%s503] sm:$0xf]
    %v505 = vld [vmem:[%s503 + $0x4] sm:$0xf]
    %v506 = vld [vmem:[%s503 + $0x8] sm:$0xf]
    %v507 = vld [vmem:[%s503 + $0xc] sm:$0xf]
    %s508 = scalar_lea.vmem %s7, 3
    %v509 = vld [vmem:[%s508] sm:$0x1]
    %v511 = vlaneseq
    %v512 = vshrl.u32 %v511, 7
    %v513 = vsub.s32 0, %v512
    %v514 = vrot.slane %v509, %v513
    %517 = vrot.lane.b32.xlu0 %v502, 120
    %v518 = vpop.permute.xlu0 %517
    %v523 = vunpack.c.l.b16 %v504
    %v524 = vunpack.c.l.b16 %v505
    %v525 = vunpack.c.l.b16 %v506
    %v526 = vunpack.c.l.b16 %v507
    %v527 = vpack.c.b16 %v524, %v523
    %v528 = vpack.c.b16 %v526, %v525
    %v532 = vsel %vm88, %v518, 0
    %534 = vmatprep.subr.bf16.mxu0 0
    %535 = vmatpush1.bf16.msra.mxu0 %v527
    %536 = vmatprep.subr.bf16.mxu0 0
    %537 = vmatpush1.bf16.msra.mxu0 %v528
    %538 = vmatprep.subr.bf16.mxu0 0
    %539 = vmatpush1.bf16.msra.mxu0 0
    %540 = vmatprep.subr.bf16.mxu0 0
    %541 = vmatpush1.bf16.msra.mxu0 0
    %542 = vmatprep.subr.bf16.mxu0 0
    %543 = vmatpush1.bf16.msra.mxu0 0
    %544 = vmatprep.subr.bf16.mxu0 0
    %545 = vmatpush1.bf16.msra.mxu0 0
    %546 = vmatprep.subr.bf16.mxu0 0
    %547 = vmatpush1.bf16.msra.mxu0 0
    %548 = vmatprep.subr.bf16.mxu0 0
    %549 = vmatpush1.bf16.msra.mxu0 0
    %550 = vmatprep.subr.bf16.mxu0 0
    %551 = vmatpush1.bf16.msra.mxu0 0
    %552 = vmatprep.subr.bf16.mxu0 0
    %553 = vmatpush1.bf16.msra.mxu0 0
    %554 = vmatprep.subr.bf16.mxu0 0
    %555 = vmatpush1.bf16.msra.mxu0 0
    %556 = vmatprep.subr.bf16.mxu0 0
    %557 = vmatpush1.bf16.msra.mxu0 0
    %558 = vmatprep.subr.bf16.mxu0 0
    %559 = vmatpush1.bf16.msra.mxu0 0
    %560 = vmatprep.subr.bf16.mxu0 0
    %561 = vmatpush1.bf16.msra.mxu0 0
    %562 = vmatprep.subr.bf16.mxu0 0
    %563 = vmatpush1.bf16.msra.mxu0 0
    %564 = vmatprep.subr.bf16.mxu0 0
    %565 = vmatpush1.bf16.msra.mxu0 0
    %566 = vmatprep.mubr.bf16.mxu0 0
    %567 = vmatmul.mubr.bf16.gmra.mrb[0].mxu0 %v532
    %v568 = vpop.f32.mrb[0].mxu0
    %v569 = vadd.f32 %v514, %v568
    %v570 = vpop.f32.mrb[0].mxu0
    %v571 = vpop.f32.mrb[0].mxu0
    %v572 = vpop.f32.mrb[0].mxu0
    %573 = vdwg.mxu0
    %v574 = vmax.f32 %v569, 0.0
    %v575 = vsel %vm201, %v569, -inf
    %576 = vmax.xlane.f32.xlu0 %v575
    %v577 = vpop.xlane.xlu0 %576
    %v578 = vsub.f32 %v569, %v577
    %v579 = vmul.f32 %v578, 1.442695
    %v580 = vpow.pop %v579
    %v581 = vsel %vm201, %v580, 0.0
    %582 = vadd.xlane.f32.xlu0 %v581
    %v583 = vpop.xlane.xlu0 %582
    %v584 = vlog2.pop %v583
    %v585 = vmul.f32 %v584, 0.6931472
    %v586 = vrcp.pop %v583
    %v587 = vmul.f32 %v580, %v578
    %v588 = vsel %vm201, %v587, 0.0
    %589 = vadd.xlane.f32.xlu0 %v588
    %v590 = vpop.xlane.xlu0 %589
    %v591 = vmul.f32 %v590, %v586
    %v592 = vsub.f32 %v591, %v585
    %v593 = vsel %vm220, %v592, 0.0
    %594 = vadd.xlane.f32.xlu0 %v593
    %v595 = vpop.xlane.xlu0 %594
    %v596 = vrot.slane %v595, 4
    %v597 = vadd.f32 %v595, %v596
    %v598 = vrot.slane %v597, 2
    %v599 = vadd.f32 %v597, %v598
    %v600 = vrot.slane %v599, 1
    %v601 = vadd.f32 %v599, %v600
    %s602 = vtos %v601
    %v603 = vstv %s602
    %v604 = vmul.f32 %v603, 0.125
    %v605 = vmul.f32 %v63, %v569
    %v606 = vsel %vm201, %v605, 0.0
    %607 = vadd.xlane.f32.xlu0 %v606
    %v608 = vpop.xlane.xlu0 %607
    %v609 = vadd.f32 %v585, %v577
    %v610 = vsub.f32 %v609, %v608
    %v611 = vsel %vm220, %v610, 0.0
    %612 = vadd.xlane.f32.xlu0 %v611
    %v613 = vpop.xlane.xlu0 %612
    %v614 = vrot.slane %v613, 4
    %v615 = vadd.f32 %v613, %v614
    %v616 = vrot.slane %v615, 2
    %v617 = vadd.f32 %v615, %v616
    %v618 = vrot.slane %v617, 1
    %v619 = vadd.f32 %v617, %v618
    %s620 = vtos %v619
    %v621 = vstv %s620
    %v622 = vmul.f32 %v621, 0.125
    %vm623 = vcmp.eq.s32.totalorder %v57, 3
    %v624 = vsel %vm623, %v622, %v500
    %v625 = vsel %vm623, %v604, %v501
    %v626 = vpack.c.bf16 %v574, %v574
    %s627 = scalar_lea.vmem [#allocation2], 64
    %v628 = vld [vmem:[%s627] sm:$0xf]
    %v629 = vld [vmem:[%s627 + $0x4] sm:$0xf]
    %v630 = vld [vmem:[%s627 + $0x8] sm:$0xf]
    %v631 = vld [vmem:[%s627 + $0xc] sm:$0xf]
    %s632 = scalar_lea.vmem %s7, 4
    %v633 = vld [vmem:[%s632] sm:$0x1]
    %v635 = vlaneseq
    %v636 = vshrl.u32 %v635, 7
    %v637 = vsub.s32 0, %v636
    %v638 = vrot.slane %v633, %v637
    %641 = vrot.lane.b32.xlu0 %v626, 120
    %v642 = vpop.permute.xlu0 %641
    %v647 = vunpack.c.l.b16 %v628
    %v648 = vunpack.c.l.b16 %v629
    %v649 = vunpack.c.l.b16 %v630
    %v650 = vunpack.c.l.b16 %v631
    %v651 = vpack.c.b16 %v648, %v647
    %v652 = vpack.c.b16 %v650, %v649
    %v656 = vsel %vm88, %v642, 0
    %658 = vmatprep.subr.bf16.mxu0 0
    %659 = vmatpush1.bf16.msra.mxu0 %v651
    %660 = vmatprep.subr.bf16.mxu0 0
    %661 = vmatpush1.bf16.msra.mxu0 %v652
    %662 = vmatprep.subr.bf16.mxu0 0
    %663 = vmatpush1.bf16.msra.mxu0 0
    %664 = vmatprep.subr.bf16.mxu0 0
    %665 = vmatpush1.bf16.msra.mxu0 0
    %666 = vmatprep.subr.bf16.mxu0 0
    %667 = vmatpush1.bf16.msra.mxu0 0
    %668 = vmatprep.subr.bf16.mxu0 0
    %669 = vmatpush1.bf16.msra.mxu0 0
    %670 = vmatprep.subr.bf16.mxu0 0
    %671 = vmatpush1.bf16.msra.mxu0 0
    %672 = vmatprep.subr.bf16.mxu0 0
    %673 = vmatpush1.bf16.msra.mxu0 0
    %674 = vmatprep.subr.bf16.mxu0 0
    %675 = vmatpush1.bf16.msra.mxu0 0
    %676 = vmatprep.subr.bf16.mxu0 0
    %677 = vmatpush1.bf16.msra.mxu0 0
    %678 = vmatprep.subr.bf16.mxu0 0
    %679 = vmatpush1.bf16.msra.mxu0 0
    %680 = vmatprep.subr.bf16.mxu0 0
    %681 = vmatpush1.bf16.msra.mxu0 0
    %682 = vmatprep.subr.bf16.mxu0 0
    %683 = vmatpush1.bf16.msra.mxu0 0
    %684 = vmatprep.subr.bf16.mxu0 0
    %685 = vmatpush1.bf16.msra.mxu0 0
    %686 = vmatprep.subr.bf16.mxu0 0
    %687 = vmatpush1.bf16.msra.mxu0 0
    %688 = vmatprep.subr.bf16.mxu0 0
    %689 = vmatpush1.bf16.msra.mxu0 0
    %690 = vmatprep.mubr.bf16.mxu0 0
    %691 = vmatmul.mubr.bf16.gmra.mrb[0].mxu0 %v656
    %v692 = vpop.f32.mrb[0].mxu0
    %v693 = vadd.f32 %v638, %v692
    %v694 = vpop.f32.mrb[0].mxu0
    %v695 = vpop.f32.mrb[0].mxu0
    %v696 = vpop.f32.mrb[0].mxu0
    %697 = vdwg.mxu0
    %v698 = vmax.f32 %v693, 0.0
    %v699 = vsel %vm201, %v693, -inf
    %700 = vmax.xlane.f32.xlu0 %v699
    %v701 = vpop.xlane.xlu0 %700
    %v702 = vsub.f32 %v693, %v701
    %v703 = vmul.f32 %v702, 1.442695
    %v704 = vpow.pop %v703
    %v705 = vsel %vm201, %v704, 0.0
    %706 = vadd.xlane.f32.xlu0 %v705
    %v707 = vpop.xlane.xlu0 %706
    %v708 = vlog2.pop %v707
    %v709 = vmul.f32 %v708, 0.6931472
    %v710 = vrcp.pop %v707
    %v711 = vmul.f32 %v704, %v702
    %v712 = vsel %vm201, %v711, 0.0
    %713 = vadd.xlane.f32.xlu0 %v712
    %v714 = vpop.xlane.xlu0 %713
    %v715 = vmul.f32 %v714, %v710
    %v716 = vsub.f32 %v715, %v709
    %v717 = vsel %vm220, %v716, 0.0
    %718 = vadd.xlane.f32.xlu0 %v717
    %v719 = vpop.xlane.xlu0 %718
    %v720 = vrot.slane %v719, 4
    %v721 = vadd.f32 %v719, %v720
    %v722 = vrot.slane %v721, 2
    %v723 = vadd.f32 %v721, %v722
    %v724 = vrot.slane %v723, 1
    %v725 = vadd.f32 %v723, %v724
    %s726 = vtos %v725
    %v727 = vstv %s726
    %v728 = vmul.f32 %v727, 0.125
    %v729 = vmul.f32 %v63, %v693
    %v730 = vsel %vm201, %v729, 0.0
    %731 = vadd.xlane.f32.xlu0 %v730
    %v732 = vpop.xlane.xlu0 %731
    %v733 = vadd.f32 %v709, %v701
    %v734 = vsub.f32 %v733, %v732
    %v735 = vsel %vm220, %v734, 0.0
    %736 = vadd.xlane.f32.xlu0 %v735
    %v737 = vpop.xlane.xlu0 %736
    %v738 = vrot.slane %v737, 4
    %v739 = vadd.f32 %v737, %v738
    %v740 = vrot.slane %v739, 2
    %v741 = vadd.f32 %v739, %v740
    %v742 = vrot.slane %v741, 1
    %v743 = vadd.f32 %v741, %v742
    %s744 = vtos %v743
    %v745 = vstv %s744
    %v746 = vmul.f32 %v745, 0.125
    %vm747 = vcmp.eq.s32.totalorder %v57, 4
    %v748 = vsel %vm747, %v746, %v624
    %v749 = vsel %vm747, %v728, %v625
    %v750 = vpack.c.bf16 %v698, %v698
    %v751 = vld [vmem:[%s8] sm:$0xf]
    %v752 = vld [vmem:[%s8 + $0x4] sm:$0xf]
    %v753 = vld [vmem:[%s8 + $0x8] sm:$0xf]
    %v754 = vld [vmem:[%s8 + $0xc] sm:$0xf]
    %v755 = vld [vmem:[%s9] sm:$0x1]
    %v757 = vlaneseq
    %v758 = vshrl.u32 %v757, 7
    %v759 = vsub.s32 0, %v758
    %v760 = vrot.slane %v755, %v759
    %763 = vrot.lane.b32.xlu0 %v750, 120
    %v764 = vpop.permute.xlu0 %763
    %v769 = vunpack.c.l.b16 %v751
    %v770 = vunpack.c.l.b16 %v752
    %v771 = vunpack.c.l.b16 %v753
    %v772 = vunpack.c.l.b16 %v754
    %v773 = vpack.c.b16 %v770, %v769
    %v774 = vpack.c.b16 %v772, %v771
    %v778 = vsel %vm88, %v764, 0
    %780 = vmatprep.subr.bf16.mxu0 0
    %781 = vmatpush1.bf16.msra.mxu0 %v773
    %782 = vmatprep.subr.bf16.mxu0 0
    %783 = vmatpush1.bf16.msra.mxu0 %v774
    %784 = vmatprep.subr.bf16.mxu0 0
    %785 = vmatpush1.bf16.msra.mxu0 0
    %786 = vmatprep.subr.bf16.mxu0 0
    %787 = vmatpush1.bf16.msra.mxu0 0
    %788 = vmatprep.subr.bf16.mxu0 0
    %789 = vmatpush1.bf16.msra.mxu0 0
    %790 = vmatprep.subr.bf16.mxu0 0
    %791 = vmatpush1.bf16.msra.mxu0 0
    %792 = vmatprep.subr.bf16.mxu0 0
    %793 = vmatpush1.bf16.msra.mxu0 0
    %794 = vmatprep.subr.bf16.mxu0 0
    %795 = vmatpush1.bf16.msra.mxu0 0
    %796 = vmatprep.subr.bf16.mxu0 0
    %797 = vmatpush1.bf16.msra.mxu0 0
    %798 = vmatprep.subr.bf16.mxu0 0
    %799 = vmatpush1.bf16.msra.mxu0 0
    %800 = vmatprep.subr.bf16.mxu0 0
    %801 = vmatpush1.bf16.msra.mxu0 0
    %802 = vmatprep.subr.bf16.mxu0 0
    %803 = vmatpush1.bf16.msra.mxu0 0
    %804 = vmatprep.subr.bf16.mxu0 0
    %805 = vmatpush1.bf16.msra.mxu0 0
    %806 = vmatprep.subr.bf16.mxu0 0
    %807 = vmatpush1.bf16.msra.mxu0 0
    %808 = vmatprep.subr.bf16.mxu0 0
    %809 = vmatpush1.bf16.msra.mxu0 0
    %810 = vmatprep.subr.bf16.mxu0 0
    %811 = vmatpush1.bf16.msra.mxu0 0
    %812 = vmatprep.mubr.bf16.mxu0 0
    %813 = vmatmul.mubr.bf16.gmra.mrb[0].mxu0 %v778
    %v814 = vpop.f32.mrb[0].mxu0
    %v815 = vadd.f32 %v760, %v814
    %v816 = vpop.f32.mrb[0].mxu0
    %v817 = vpop.f32.mrb[0].mxu0
    %v818 = vpop.f32.mrb[0].mxu0
    %819 = vdwg.mxu0
    %v820 = vsel %vm201, %v815, -inf
    %821 = vmax.xlane.f32.xlu0 %v820
    %v822 = vpop.xlane.xlu0 %821
    %v823 = vsub.f32 %v815, %v822
    %v824 = vmul.f32 %v823, 1.442695
    %v825 = vpow.pop %v824
    %v826 = vsel %vm201, %v825, 0.0
    %827 = vadd.xlane.f32.xlu0 %v826
    %v828 = vpop.xlane.xlu0 %827
    %v829 = vlog2.pop %v828
    %v830 = vmul.f32 %v829, 0.6931472
    %v831 = vrcp.pop %v828
    %v832 = vmul.f32 %v825, %v823
    %v833 = vsel %vm201, %v832, 0.0
    %834 = vadd.xlane.f32.xlu0 %v833
    %v835 = vpop.xlane.xlu0 %834
    %v836 = vmul.f32 %v835, %v831
    %v837 = vsub.f32 %v836, %v830
    %v838 = vsel %vm220, %v837, 0.0
    %839 = vadd.xlane.f32.xlu0 %v838
    %v840 = vpop.xlane.xlu0 %839
    %v841 = vrot.slane %v840, 4
    %v842 = vadd.f32 %v840, %v841
    %v843 = vrot.slane %v842, 2
    %v844 = vadd.f32 %v842, %v843
    %v845 = vrot.slane %v844, 1
    %v846 = vadd.f32 %v844, %v845
    %s847 = vtos %v846
    %v848 = vstv %s847
    %v849 = vmul.f32 %v848, 0.125
    %v850 = vmul.f32 %v63, %v815
    %v851 = vsel %vm201, %v850, 0.0
    %852 = vadd.xlane.f32.xlu0 %v851
    %v853 = vpop.xlane.xlu0 %852
    %v854 = vadd.f32 %v830, %v822
    %v855 = vsub.f32 %v854, %v853
    %v856 = vsel %vm220, %v855, 0.0
    %857 = vadd.xlane.f32.xlu0 %v856
    %v858 = vpop.xlane.xlu0 %857
    %v859 = vrot.slane %v858, 4
    %v860 = vadd.f32 %v858, %v859
    %v861 = vrot.slane %v860, 2
    %v862 = vadd.f32 %v860, %v861
    %v863 = vrot.slane %v862, 1
    %v864 = vadd.f32 %v862, %v863
    %s865 = vtos %v864
    %v866 = vstv %s865
    %v867 = vmul.f32 %v866, 0.125
    %vm868 = vcmp.eq.s32.totalorder %v57, 5
    %v869 = vsel %vm868, %v867, %v748
    %v870 = vsel %vm868, %v849, %v749
    %v871 = vld [vmem:[%s2] sm:$0x1]
    %v872 = vmul.f32 %v869, %v871
    %v873 = vld [vmem:[%s3] sm:$0x1]
    %v874 = vadd.f32 %v872, %v873
    %vm875 = vcmask 40960
    %v876 = vsel %vm875, %v874, 0.0
    %877 = vadd.xlane.f32.xlu0 %v876
    %v878 = vpop.xlane.xlu0 %877
    %v879 = vmul.f32 %v878, 0.16666667
    %vm880 = vcmask 0
    %881 = vst.msk [vmem:[#allocation5] sm:$0x1] %vm880, %v879
    %882 = vst.msk [vmem:[#allocation6] sm:$0x1] %vm875, %v870
    // Predicated region
    $region46: #{tpu_custom_call.1} parent=1 // pred_check
      _
    $region47: #{tpu_custom_call.1} parent=1 // pred_check_branch
      %884 = sbr.rel (0) target = $region49
    $region48: #{tpu_custom_call.1} parent=1 // pred_region
      %s886 = ssub.s32 16, 16
      %887 = vsyncadd [#allocation4], %s886
      %s889 = sshll.u32 [#allocation5], 4
      %s890 = int_to_ptr.vmem [resolvable:$true] %s889
      %892 = dma.vmem_to_hbm [thread:$0]  %s890, 16, %s10, [#allocation4]
    $region49: #{tpu_custom_call.1} parent=1 // pred_fallthru
      _
    // Predicated region
    $region50: #{tpu_custom_call.1} parent=1 // pred_check
      _
    $region51: #{tpu_custom_call.1} parent=1 // pred_check_branch
      %894 = sbr.rel (0) target = $region53
    $region52: #{tpu_custom_call.1} parent=1 // pred_region
      %s896 = ssub.s32 16, 16
      %897 = vsyncadd [#allocation7], %s896
      %s899 = sshll.u32 [#allocation6], 4
      %s900 = int_to_ptr.vmem [resolvable:$true] %s899
      %902 = dma.vmem_to_hbm [thread:$0]  %s900, 16, %s11, [#allocation7]
    $region53: #{tpu_custom_call.1} parent=1 // pred_fallthru
      _
    // Predicated region
    $region54: #{tpu_custom_call.1} parent=1 // pred_check
      _
    $region55: #{tpu_custom_call.1} parent=1 // pred_check_branch
      %904 = sbr.rel (0) target = $region57
    $region56: #{tpu_custom_call.1} parent=1 // pred_region
      %905 = dma.done [#allocation4], 16
    $region57: #{tpu_custom_call.1} parent=1 // pred_fallthru
      _
    // Predicated region
    $region58: #{tpu_custom_call.1} parent=1 // pred_check
      _
    $region59: #{tpu_custom_call.1} parent=1 // pred_check_branch
      %907 = sbr.rel (0) target = $region61
    $region60: #{tpu_custom_call.1} parent=1 // pred_region
      %908 = dma.done [#allocation7], 16
    $region61: #{tpu_custom_call.1} parent=1 // pred_fallthru
      _
    %909 = vsyncpa [#allocation3], 1
    %910 = vsyncpa [#allocation4], 1
    %911 = vsyncpa [#allocation7], 1

</llo_original>
